<compile_context>
chip_gen: v7x
topology: tpu7x:2x2x1
jax: 0.10.0
libtpu: 0.0.40
codegen_flags: <defaults>
</compile_context>

<pallas_src>
import functools
import numpy as np
import jax
import jax.numpy as jnp
from jax import lax
from jax.experimental import pallas as pl
from jax.experimental.pallas import tpu as pltpu


# ----------------------------------------------------------------------------
# helpers
# ----------------------------------------------------------------------------
def _choose_tile(n, target):
    """Largest row tile <= target that divides n and keeps (8,128) tiling legal."""
    if n <= target:
        return n
    for d in range(target, 7, -1):
        if n % d == 0 and d % 8 == 0:
            return d
    return n


def _softmax_ce_bins_on_sublanes(lg, tb):
    """-log_softmax(lg)[tb] with the class axis on dim 1 (sublane axis).

    lg: (T, nb, N) float32, tb: (T, N) int32  ->  (T, N) float32
    """
    m = jnp.max(lg, axis=1, keepdims=True)                       # (T, 1, N)
    z = lg - m
    lse = jnp.log(jnp.sum(jnp.exp(z), axis=1, keepdims=True))    # (T, 1, N)
    idx = lax.broadcasted_iota(jnp.int32, lg.shape, 1)
    picked = jnp.sum(jnp.where(idx == tb[:, None, :], z, 0.0), axis=1)  # (T, N)
    return lse[:, 0, :] - picked


def _accumulate_num_den(out_ref, tile_idx, num, den):
    """Accumulate scalar num/den into the resident (1, 2, 128) output block."""
    @pl.when(tile_idx == 0)
    def _():
        out_ref[...] = jnp.zeros_like(out_ref)

    shape = out_ref.shape
    row = lax.broadcasted_iota(jnp.int32, shape, 1)
    out_ref[...] += jnp.where(row == 0,
                              jnp.broadcast_to(num, shape),
                              jnp.broadcast_to(den, shape))


# ----------------------------------------------------------------------------
# Pallas kernels: analytic binning + softmax CE + masked reduction (hot path)
# ----------------------------------------------------------------------------
def _dist_ce_kernel(logits_ref, d2_ref, mask_ref, out_ref, *,
                    no_bins, min_bin, max_bin):
    t = pl.program_id(1)
    lg = logits_ref[0].astype(jnp.float32)   # (TN, nb, N)
    d2 = d2_ref[0]                           # (TN, N) squared distances
    msk = mask_ref[0]                        # (TN, N)

    # torch: boundaries = linspace(min_bin, max_bin, no_bins-1)**2
    #        true_bins  = sum(d2 > boundaries)
    # analytic equivalent for uniform boundaries: #{b_k < sqrt(d2)}
    n_bnd = no_bins - 1
    inv_step = float(n_bnd - 1) / float(max_bin - min_bin)
    d = jnp.sqrt(d2)
    tb = jnp.clip(jnp.ceil((d - min_bin) * inv_step),
                  0.0, float(n_bnd)).astype(jnp.int32)

    err = _softmax_ce_bins_on_sublanes(lg, tb)       # (TN, N)
    _accumulate_num_den(out_ref, t, jnp.sum(err * msk), jnp.sum(msk))


def _dihedral_ce_kernel(logits_ref, dih_ref, contact_ref, mask_ref, out_ref, *,
                        no_bins, min_bin, max_bin, max_d2):
    t = pl.program_id(1)
    lg = logits_ref[0].astype(jnp.float32)   # (TN, nb, N)
    dih = dih_ref[0]                         # (TN, N) dihedrals in degrees
    cdist = contact_ref[0]                   # (TN, N) squared contact distances
    msk = mask_ref[0]                        # (TN, N)

    # torch: boundaries = linspace(min,max,no_bins); b[0]-=1e-5; b[-1]+=1e-5
    #        tb = sum(dih > boundaries) - 1 ; tb[contact] = no_bins - 1
    inv_step = float(no_bins - 1) / float(max_bin - min_bin)
    interior = jnp.clip(jnp.ceil((dih - min_bin) * inv_step) - 1.0,
                        0.0, float(no_bins - 2))
    cnt = ((dih > (min_bin - 1e-5)).astype(jnp.float32) + interior
           + (dih > (max_bin + 1e-5)).astype(jnp.float32))
    tb = jnp.clip(cnt - 1.0, 0.0, float(no_bins - 1)).astype(jnp.int32)
    tb = jnp.where(cdist > max_d2, no_bins - 1, tb)

    err = _softmax_ce_bins_on_sublanes(lg, tb)
    _accumulate_num_den(out_ref, t, jnp.sum(err * msk), jnp.sum(msk))


def _label_ce_kernel(logits_ref, labels_ref, mask_ref, out_ref):
    t = pl.program_id(1)
    lg = logits_ref[0].astype(jnp.float32)   # (TS, C, R)
    lbl = labels_ref[0]                      # (TS, R) int32
    msk = mask_ref[0]                        # (TS, R)
    err = _softmax_ce_bins_on_sublanes(lg, lbl)
    _accumulate_num_den(out_ref, t, jnp.sum(err * msk), jnp.sum(msk))


# ----------------------------------------------------------------------------
# pallas_call wrappers
# ----------------------------------------------------------------------------
_VMEM_LIMIT = 64 * 1024 * 1024


def _pairwise_ce_call(logits, planes, kernel):
    """logits: [B, N, N, nb] (native dtype); planes: list of [B, N, N] f32."""
    B, N, _, nb = logits.shape
    logits_t = jnp.transpose(logits, (0, 1, 3, 2))   # [B, N, nb, N], residues on lanes
    TN = _choose_tile(N, 128)
    T = N // TN
    in_specs = [pl.BlockSpec((1, TN, nb, N), lambda b, t: (b, t, 0, 0))]
    in_specs += [pl.BlockSpec((1, TN, N), lambda b, t: (b, t, 0)) for _ in planes]
    out = pl.pallas_call(
        kernel,
        out_shape=jax.ShapeDtypeStruct((B, 2, 128), jnp.float32),
        grid=(B, T),
        in_specs=in_specs,
        out_specs=pl.BlockSpec((1, 2, 128), lambda b, t: (b, 0, 0)),
        compiler_params=pltpu.CompilerParams(
            dimension_semantics=("parallel", "arbitrary"),
            vmem_limit_bytes=_VMEM_LIMIT),
    )(logits_t, *[p.astype(jnp.float32) for p in planes])
    return out[:, 0, 0], out[:, 1, 0]


def distogram_ce(logits, d2, sq_mask, *, no_bins, min_bin, max_bin):
    kernel = functools.partial(_dist_ce_kernel, no_bins=no_bins,
                               min_bin=float(min_bin), max_bin=float(max_bin))
    return _pairwise_ce_call(logits, [d2, sq_mask], kernel)


def dihedral_ce(logits, dih, contact_d2, sq_mask, *,
                no_bins, min_bin, max_bin, max_d2):
    kernel = functools.partial(_dihedral_ce_kernel, no_bins=no_bins,
                               min_bin=float(min_bin), max_bin=float(max_bin),
                               max_d2=float(max_d2))
    return _pairwise_ce_call(logits, [dih, contact_d2, sq_mask], kernel)


def label_ce(logits, labels, mask):
    B, S, R, C = logits.shape
    logits_t = jnp.transpose(logits, (0, 1, 3, 2))   # [B, S, C, R], residues on lanes
    TS = _choose_tile(S, 32)
    T = S // TS
    out = pl.pallas_call(
        _label_ce_kernel,
        out_shape=jax.ShapeDtypeStruct((B, 2, 128), jnp.float32),
        grid=(B, T),
        in_specs=[
            pl.BlockSpec((1, TS, C, R), lambda b, t: (b, t, 0, 0)),
            pl.BlockSpec((1, TS, R), lambda b, t: (b, t, 0)),
            pl.BlockSpec((1, TS, R), lambda b, t: (b, t, 0)),
        ],
        out_specs=pl.BlockSpec((1, 2, 128), lambda b, t: (b, 0, 0)),
        compiler_params=pltpu.CompilerParams(
            dimension_semantics=("parallel", "arbitrary"),
            vmem_limit_bytes=_VMEM_LIMIT),
    )(logits_t, labels.astype(jnp.int32), mask.astype(jnp.float32))
    return out[:, 0, 0], out[:, 1, 0]


# ----------------------------------------------------------------------------
# JAX glue: pair geometry from coordinates (O(N^2 * 3), not the hot path)
# TODO(synk): pair geometry (d2 / dihedrals / sq_mask) is still materialized
#             in XLA rather than recomputed per tile inside the kernel.
# ----------------------------------------------------------------------------
def _pair_sq_dists(x):
    d = x[..., :, None, :] - x[..., None, :, :]
    return jnp.sum(d * d, axis=-1)


def _pair_dihedrals_deg(a, b):
    # TODO(synk): calc_dihedral source not provided upstream; standard
    # atan2-based dihedral convention assumed (p1=a_i, p2=b_i, p3=b_j, p4=a_j).
    p1 = a[..., :, None, :]
    p2 = b[..., :, None, :]
    p3 = b[..., None, :, :]
    p4 = a[..., None, :, :]
    b1 = p2 - p1
    b2 = p3 - p2
    b3 = p4 - p3
    n1 = jnp.cross(b1, b2)
    n2 = jnp.cross(b2, b3)
    u2 = b2 / (jnp.linalg.norm(b2, axis=-1, keepdims=True) + 1e-9)
    m1 = jnp.cross(n1, u2)
    x = jnp.sum(n1 * n2, axis=-1)
    y = jnp.sum(m1 * n2, axis=-1)
    return jnp.degrees(jnp.arctan2(y, x))


# ----------------------------------------------------------------------------
# Loss functions (numerics of the torch reference)
# ----------------------------------------------------------------------------
def _distogram_loss(logits, atom_position, atom_mask, *, min_bin, max_bin,
                    no_bins, eps=1e-6, reduce=True, **kw):
    d2 = _pair_sq_dists(atom_position)
    sqmask = atom_mask[..., :, None] * atom_mask[..., None, :]
    num, den = distogram_ce(logits, d2, sqmask, no_bins=no_bins,
                            min_bin=min_bin, max_bin=max_bin)
    per = num / (eps + den) if reduce else num
    return jnp.mean(per)


def _dihedral_loss(logits, a, b, a_mask, b_mask, *, min_bin, max_bin, no_bins,
                   max_dist, eps=1e-6, reduce=True, **kw):
    dih = _pair_dihedrals_deg(a, b)
    contact_d2 = _pair_sq_dists(b)
    mask = a_mask * b_mask
    sqmask = mask[..., :, None] * mask[..., None, :]
    num, den = dihedral_ce(logits, dih, contact_d2, sqmask, no_bins=no_bins,
                           min_bin=min_bin, max_bin=max_bin,
                           max_d2=float(max_dist) ** 2)
    per = num / (eps + den) if reduce else num
    return jnp.mean(per)


def _masked_msa_loss(logits, true_msa, bert_mask, *, num_classes, eps=1e-8,
                     **kw):
    num, den = label_ce(logits, true_msa, bert_mask)
    scale = 0.5
    per = scale * num / (eps + scale * den)
    return jnp.mean(per)


class GeometryLoss:
    """JAX/Pallas port of demofold GeometryLoss.forward."""

    def __init__(self, config):
        self.config = config

    def __call__(self, out, batch, _return_breakdown=False):
        cfg = self.config
        # TODO(synk): the 6 pairwise losses remain separate pallas_calls;
        #             fusing them into one stacked call is a further launch-
        #             overhead optimization not applied here.
        loss_fns = {
            'PP': lambda: _distogram_loss(out['PP_logits'], batch['atom_P'],
                                          batch['atom_P_mask'], **cfg['PP']),
            'CC': lambda: _distogram_loss(out['CC_logits'], batch['C4_prime'],
                                          batch['C4_prime_mask'], **cfg['CC']),
            'NN': lambda: _distogram_loss(out['NN_logits'], batch['glycos_N'],
                                          batch['glycos_N_mask'], **cfg['NN']),
            'PCCP': lambda: _dihedral_loss(out['PCCP_logits'], batch['atom_P'],
                                           batch['C4_prime'],
                                           batch['atom_P_mask'],
                                           batch['C4_prime_mask'],
                                           **cfg['PCCP']),
            'PNNP': lambda: _dihedral_loss(out['PNNP_logits'], batch['atom_P'],
                                           batch['glycos_N'],
                                           batch['atom_P_mask'],
                                           batch['glycos_N_mask'],
                                           **cfg['PNNP']),
            'CNNC': lambda: _dihedral_loss(out['CNNC_logits'],
                                           batch['C4_prime'],
                                           batch['glycos_N'],
                                           batch['C4_prime_mask'],
                                           batch['glycos_N_mask'],
                                           **cfg['CNNC']),
            'masked_msa': lambda: _masked_msa_loss(out['masked_msa_logits'],
                                                   batch['true_msa'],
                                                   batch['bert_mask'],
                                                   **cfg['masked_msa']),
        }
        cum_loss = jnp.asarray(0.0, jnp.float32)
        losses = {}
        for name, fn in loss_fns.items():
            w = cfg[name]['weight']
            l = fn()
            # torch: NaN/Inf losses are skipped (replaced by 0)
            l = jnp.where(jnp.isnan(l) | jnp.isinf(l), 0.0, l)
            cum_loss = cum_loss + w * l
            losses[name] = l
        losses['unscaled_loss'] = cum_loss
        seq_len = jnp.mean(batch['seq_length'].astype(jnp.float32))
        crop_len = batch['restype'].shape[-1]
        cum_loss = cum_loss * jnp.sqrt(jnp.minimum(seq_len, float(crop_len)))
        losses['loss'] = cum_loss
        if not _return_breakdown:
            return cum_loss
        return cum_loss, losses


if __name__ == "__main__":
    key = jax.random.PRNGKey(0)
    B, N, S = 2, 16, 2                 # batch, N_res, N_seq
    nb_dist, nb_dih, n_cls = 38, 37, 23
    ks = jax.random.split(key, 16)
    batch = {
        'atom_P': 10.0 * jax.random.normal(ks[0], (B, N, 3), jnp.float32),
        'C4_prime': 10.0 * jax.random.normal(ks[1], (B, N, 3), jnp.float32),
        'glycos_N': 10.0 * jax.random.normal(ks[2], (B, N, 3), jnp.float32),
        'atom_P_mask': (jax.random.uniform(ks[3], (B, N)) > 0.1).astype(jnp.float32),
        'C4_prime_mask': (jax.random.uniform(ks[4], (B, N)) > 0.1).astype(jnp.float32),
        'glycos_N_mask': (jax.random.uniform(ks[5], (B, N)) > 0.1).astype(jnp.float32),
        'true_msa': jax.random.randint(ks[6], (B, S, N), 0, n_cls),
        'bert_mask': (jax.random.uniform(ks[7], (B, S, N)) > 0.5).astype(jnp.float32),
        'seq_length': jnp.full((B,), N, jnp.int32),
        'restype': jax.random.randint(ks[8], (B, N), 0, 4),
    }
    out = {
        'PP_logits': jax.random.normal(ks[9], (B, N, N, nb_dist), jnp.float32),
        'CC_logits': jax.random.normal(ks[10], (B, N, N, nb_dist), jnp.float32),
        'NN_logits': jax.random.normal(ks[11], (B, N, N, nb_dist), jnp.float32),
        'PCCP_logits': jax.random.normal(ks[12], (B, N, N, nb_dih), jnp.float32),
        'PNNP_logits': jax.random.normal(ks[13], (B, N, N, nb_dih), jnp.float32),
        'CNNC_logits': jax.random.normal(ks[14], (B, N, N, nb_dih), jnp.float32),
        'masked_msa_logits': jax.random.normal(ks[15], (B, S, N, n_cls), jnp.float32),
    }
    config = {
        'PP': dict(weight=0.3, min_bin=2.0, max_bin=40.0, no_bins=nb_dist, eps=1e-6),
        'CC': dict(weight=0.3, min_bin=2.0, max_bin=40.0, no_bins=nb_dist, eps=1e-6),
        'NN': dict(weight=0.3, min_bin=2.0, max_bin=40.0, no_bins=nb_dist, eps=1e-6),
        'PCCP': dict(weight=0.3, min_bin=-180.0, max_bin=180.0, no_bins=nb_dih,
                     max_dist=30.0, eps=1e-6),
        'PNNP': dict(weight=0.3, min_bin=-180.0, max_bin=180.0, no_bins=nb_dih,
                     max_dist=30.0, eps=1e-6),
        'CNNC': dict(weight=0.3, min_bin=-180.0, max_bin=180.0, no_bins=nb_dih,
                     max_dist=30.0, eps=1e-6),
        'masked_msa': dict(weight=2.0, num_classes=n_cls, eps=1e-8),
    }
    loss_mod = GeometryLoss(config)
    cum_loss, losses = loss_mod(out, batch, _return_breakdown=True)
    jax.block_until_ready(cum_loss)
    print("KERNEL_OK")
</pallas_src>

<mosaic_0001>
module attributes {stable_mosaic.version = 11 : i64} {
  func.func @_dist_ce_kernel(%arg0: i32, %arg1: i32, %arg2: memref<1x16x38x16xf32, #tpu.memory_space<vmem>>, %arg3: memref<1x16x16xf32, #tpu.memory_space<vmem>>, %arg4: memref<1x16x16xf32, #tpu.memory_space<vmem>>, %arg5: memref<1x2x128xf32, #tpu.memory_space<vmem>>) attributes {dimension_semantics = [#tpu.dimension_semantics<parallel>, #tpu.dimension_semantics<arbitrary>], iteration_bounds = array<i64: 2, 1>, scalar_prefetch = 0 : i64, scratch_operands = 0 : i64, tpu.core_type = #tpu.core_type<tc>, window_params = [{transform_indices = @transform_0, window_bounds = array<i64: 1, 16, 38, 16>}, {transform_indices = @transform_1, window_bounds = array<i64: 1, 16, 16>}, {transform_indices = @transform_2, window_bounds = array<i64: 1, 16, 16>}, {transform_indices = @transform_3, window_bounds = array<i64: 1, 2, 128>}]} {
    %c0 = arith.constant 0 : index
    %c0_0 = arith.constant 0 : index
    %c0_1 = arith.constant 0 : index
    %c0_2 = arith.constant 0 : index
    %0 = vector.load %arg2[%c0, %c0_0, %c0_1, %c0_2] : memref<1x16x38x16xf32, #tpu.memory_space<vmem>>, vector<1x16x38x16xf32>
    %1 = vector.shape_cast %0 : vector<1x16x38x16xf32> to vector<16x38x16xf32>
    %c0_3 = arith.constant 0 : index
    %c0_4 = arith.constant 0 : index
    %c0_5 = arith.constant 0 : index
    %2 = vector.load %arg3[%c0_3, %c0_4, %c0_5] : memref<1x16x16xf32, #tpu.memory_space<vmem>>, vector<1x16x16xf32>
    %3 = vector.shape_cast %2 : vector<1x16x16xf32> to vector<16x16xf32>
    %c0_6 = arith.constant 0 : index
    %c0_7 = arith.constant 0 : index
    %c0_8 = arith.constant 0 : index
    %4 = vector.load %arg4[%c0_6, %c0_7, %c0_8] : memref<1x16x16xf32, #tpu.memory_space<vmem>>, vector<1x16x16xf32>
    %5 = vector.shape_cast %4 : vector<1x16x16xf32> to vector<16x16xf32>
    %6 = math.sqrt %3 : vector<16x16xf32>
    %cst = arith.constant 2.000000e+00 : f32
    %7 = vector.broadcast %cst : f32 to vector<16x16xf32>
    %8 = arith.subf %6, %7 : vector<16x16xf32>
    %cst_9 = arith.constant 0.947368443 : f32
    %9 = vector.broadcast %cst_9 : f32 to vector<16x16xf32>
    %10 = arith.mulf %8, %9 : vector<16x16xf32>
    %11 = math.ceil %10 : vector<16x16xf32>
    %cst_10 = arith.constant 0.000000e+00 : f32
    %cst_11 = arith.constant 3.700000e+01 : f32
    %12 = vector.broadcast %cst_10 : f32 to vector<16x16xf32>
    %13 = arith.maximumf %12, %11 : vector<16x16xf32>
    %14 = vector.broadcast %cst_11 : f32 to vector<16x16xf32>
    %15 = arith.minimumf %14, %13 : vector<16x16xf32>
    %16 = arith.fptosi %15 : vector<16x16xf32> to vector<16x16xi32>
    %cst_12 = arith.constant dense<0xFF800000> : vector<16x16xf32>
    %17 = vector.multi_reduction <maximumf>, %1, %cst_12 [1] : vector<16x38x16xf32> to vector<16x16xf32>
    %18 = vector.shape_cast %17 : vector<16x16xf32> to vector<16x1x16xf32>
    %19 = vector.broadcast %18 : vector<16x1x16xf32> to vector<16x38x16xf32>
    %20 = arith.subf %1, %19 : vector<16x38x16xf32>
    %21 = math.exp %20 : vector<16x38x16xf32>
    %cst_13 = arith.constant dense<0.000000e+00> : vector<16x16xf32>
    %22 = vector.multi_reduction <add>, %21, %cst_13 [1] : vector<16x38x16xf32> to vector<16x16xf32>
    %23 = vector.shape_cast %22 : vector<16x16xf32> to vector<16x1x16xf32>
    %24 = math.log %23 : vector<16x1x16xf32>
    %25 = tpu.iota {dimensions = array<i32: 1>} : vector<16x38x16xi32>
    %26 = vector.shape_cast %16 : vector<16x16xi32> to vector<16x1x16xi32>
    %27 = vector.broadcast %26 : vector<16x1x16xi32> to vector<16x38x16xi32>
    %28 = arith.cmpi eq, %25, %27 : vector<16x38x16xi32>
    %cst_14 = arith.constant 0.000000e+00 : f32
    %29 = vector.broadcast %cst_14 : f32 to vector<16x38x16xf32>
    %30 = arith.select %28, %20, %29 : vector<16x38x16xi1>, vector<16x38x16xf32>
    %cst_15 = arith.constant dense<0.000000e+00> : vector<16x16xf32>
    %31 = vector.multi_reduction <add>, %30, %cst_15 [1] : vector<16x38x16xf32> to vector<16x16xf32>
    %32 = vector.shape_cast %24 : vector<16x1x16xf32> to vector<16x16xf32>
    %33 = arith.subf %32, %31 : vector<16x16xf32>
    %34 = arith.mulf %33, %5 : vector<16x16xf32>
    %35 = vector.shape_cast %34 : vector<16x16xf32> to vector<1x16x16xf32>
    %cst_16 = arith.constant dense<0.000000e+00> : vector<1xf32>
    %36 = vector.multi_reduction <add>, %35, %cst_16 [1, 2] : vector<1x16x16xf32> to vector<1xf32>
    %37 = vector.shape_cast %36 : vector<1xf32> to vector<1x1x1xf32>
    %38 = vector.extract %37[0, 0, 0] : f32 from vector<1x1x1xf32>
    %39 = vector.shape_cast %5 : vector<16x16xf32> to vector<1x16x16xf32>
    %cst_17 = arith.constant dense<0.000000e+00> : vector<1xf32>
    %40 = vector.multi_reduction <add>, %39, %cst_17 [1, 2] : vector<1x16x16xf32> to vector<1xf32>
    %41 = vector.shape_cast %40 : vector<1xf32> to vector<1x1x1xf32>
    %42 = vector.extract %41[0, 0, 0] : f32 from vector<1x1x1xf32>
    %c0_i32 = arith.constant 0 : i32
    %43 = arith.cmpi eq, %arg1, %c0_i32 : i32
    %44 = arith.extui %43 : i1 to i32
    %c0_i32_18 = arith.constant 0 : i32
    %45 = arith.cmpi ne, %44, %c0_i32_18 : i32
    scf.if %45 {
      %cst_26 = arith.constant 0.000000e+00 : f32
      %55 = vector.broadcast %cst_26 : f32 to vector<1x2x128xf32>
      %c0_27 = arith.constant 0 : index
      %c0_28 = arith.constant 0 : index
      %c0_29 = arith.constant 0 : index
      %56 = vector.load %arg5[%c0_27, %c0_28, %c0_29] : memref<1x2x128xf32, #tpu.memory_space<vmem>>, vector<1x2x128xf32>
      tpu.vector_store %arg5[%c0_27, %c0_28, %c0_29], %55 {strides = array<i32>} : memref<1x2x128xf32, #tpu.memory_space<vmem>>, vector<1x2x128xf32>,
    } else {
    }
    %46 = tpu.iota {dimensions = array<i32: 1>} : vector<1x2x128xi32>
    %c0_19 = arith.constant 0 : index
    %c0_20 = arith.constant 0 : index
    %c0_21 = arith.constant 0 : index
    %47 = vector.load %arg5[%c0_19, %c0_20, %c0_21] : memref<1x2x128xf32, #tpu.memory_space<vmem>>, vector<1x2x128xf32>
    %c0_i32_22 = arith.constant 0 : i32
    %48 = vector.broadcast %c0_i32_22 : i32 to vector<1x2x128xi32>
    %49 = arith.cmpi eq, %46, %48 : vector<1x2x128xi32>
    %50 = vector.broadcast %38 : f32 to vector<1x2x128xf32>
    %51 = vector.broadcast %42 : f32 to vector<1x2x128xf32>
    %52 = arith.select %49, %50, %51 : vector<1x2x128xi1>, vector<1x2x128xf32>
    %53 = arith.addf %47, %52 : vector<1x2x128xf32>
    %c0_23 = arith.constant 0 : index
    %c0_24 = arith.constant 0 : index
    %c0_25 = arith.constant 0 : index
    %54 = vector.load %arg5[%c0_23, %c0_24, %c0_25] : memref<1x2x128xf32, #tpu.memory_space<vmem>>, vector<1x2x128xf32>
    tpu.vector_store %arg5[%c0_23, %c0_24, %c0_25], %53 {strides = array<i32>} : memref<1x2x128xf32, #tpu.memory_space<vmem>>, vector<1x2x128xf32>,
    return
  }
  func.func @transform_0(%arg0: i32, %arg1: i32) -> (i32, i32, i32, i32) {
    %c0_i32 = arith.constant 0 : i32
    %c0_i32_0 = arith.constant 0 : i32
    %c0_i32_1 = arith.constant 0 : i32
    return %arg0, %arg1, %c0_i32, %c0_i32_0 : i32, i32, i32, i32
  }
  func.func @transform_1(%arg0: i32, %arg1: i32) -> (i32, i32, i32) {
    %c0_i32 = arith.constant 0 : i32
    %c0_i32_0 = arith.constant 0 : i32
    return %arg0, %arg1, %c0_i32 : i32, i32, i32
  }
  func.func @transform_2(%arg0: i32, %arg1: i32) -> (i32, i32, i32) {
    %c0_i32 = arith.constant 0 : i32
    %c0_i32_0 = arith.constant 0 : i32
    return %arg0, %arg1, %c0_i32 : i32, i32, i32
  }
  func.func @transform_3(%arg0: i32, %arg1: i32) -> (i32, i32, i32) {
    %c0_i32 = arith.constant 0 : i32
    %c0_i32_0 = arith.constant 0 : i32
    %c0_i32_1 = arith.constant 0 : i32
    return %arg0, %c0_i32, %c0_i32_0 : i32, i32, i32
  }
}

</mosaic_0001>

<llo_original>
// kernel: tpu_custom_call.1
$region0: #{tpu_custom_call.1}
  #allocation0 [shape = 'u32[]', space=smem, size = 0x4, offset = 0x4, fixed_abs, tag = 'smem constant byte address 0x4 - core index']
  #allocation1 [shape = 'u32[144,128]{1,0:T(1,128)}', space=vmem, size = 0x12000, scoped, tag = 'internal scratch']
  %s0 = inlined_call_operand.hbm [shape: f32[2,16,38,16], index: 0, kind: input, shape index: {}]
  %s1 = inlined_call_operand.hbm [shape: f32[2,16,16], index: 1, kind: input, shape index: {}]
  %s2 = inlined_call_operand.hbm [shape: f32[2,16,16], index: 2, kind: input, shape index: {}]
  %s3 = inlined_call_operand.hbm [shape: f32[2,2,128], index: 3, kind: output, shape index: {}]
  %s4 = sld [smem:[#allocation0]]
  $region61: #{tpu_custom_call.1} parent=0
    _
  %s6 = ssub.s32 1, %s4
  %s7 = scalar_select 0, %s6, %s4
  $region1: #{tpu_custom_call.1} parent=0
    #allocation2 [shape = 'u8[655360]{0}', space=vmem, size = 0xa0000, scoped, tag = 'input window, operand 0']
    #allocation3 [shape = 's32[2]{0}', space=sflag, size = 0x8, scoped, tag = 'scoped memory for tpu_custom_call.1']
    #allocation4 [shape = 's32[2]{0}', space=sflag, size = 0x8, scoped, tag = 'scoped memory for tpu_custom_call.1']
    #allocation5 [shape = 'u8[16384]{0}', space=vmem, size = 0x4000, scoped, tag = 'input window, operand 1']
    #allocation6 [shape = 's32[2]{0}', space=sflag, size = 0x8, scoped, tag = 'scoped memory for tpu_custom_call.1']
    #allocation7 [shape = 'u8[16384]{0}', space=vmem, size = 0x4000, scoped, tag = 'input window, operand 2']
    #allocation8 [shape = 'u8[2048]{0}', space=vmem, size = 0x800, scoped, tag = 'output window, operand 0']
    %8 = vsyncpa [#allocation3], 0
    %s9 = scalar_lea.sflag [#allocation3], 1
    %10 = vsyncpa %s9, 0
    %11 = vsyncpa [#allocation6], 0
    %s12 = scalar_lea.sflag [#allocation6], 1
    %13 = vsyncpa %s12, 0
    %14 = vsyncpa [#allocation4], 0
    %s15 = scalar_lea.sflag [#allocation4], 1
    %16 = vsyncpa %s15, 0
    loop: start=0, step=1, limit=4
    $region2: #{tpu_custom_call.1} parent=1 // loop_pre_header
      _
    $region3: #{tpu_custom_call.1} parent=1 // loop_header
      %s18 = sphi 0, %s22
      %p19 = scmp.ge.s32.totalorder %s18, 4
      %s25 = sphi 0, %s37
      %s26 = sphi 0, %s33
      %s27 = sphi 0, %s25
      %s28 = sphi 0, %s26
      %s29 = sphi 0, %s27
      %s30 = sphi 0, %s28
      %s42 = sphi 0, %s44
      %s45 = sphi 0, %s42
      %s46 = sphi 0, %s45
      %s62 = sphi 0, %s46
      %s70 = sphi 0, %s72
      %s73 = sphi 0, %s70
      %s74 = sphi 0, %s73
      %s90 = sphi 0, %s74
      %s98 = sphi 0, %s100
      %s101 = sphi 0, %s98
      %s102 = sphi 0, %s101
      %s118 = sphi 0, %s102
      %s124 = sphi 0, %s126
      %s127 = sphi 0, %s124
      %s128 = sphi 0, %s127
      %s144 = sphi 0, %s128
    $region4: #{tpu_custom_call.1} parent=1 // loop_header_branch
      %21 = sbr.rel (%p19) target = $region8
    $region5: #{tpu_custom_call.1} parent=1 // loop_body
      %s23 = ssub.s32 %s18, 1
      %s24 = ssub.s32 %s18, 2
      %s31 = sadd.s32 1, %s26
      %p32 = scmp.ge.s32.totalorder %s31, 1
      %s33 = scalar_select %p32, 0, %s31
      %s34 = sadd.s32 1, %s25
      %s35 = scalar_select %p32, %s34, %s25
      %p36 = scmp.ge.s32.totalorder %s35, 2
      %s37 = scalar_select %p36, 0, %s35
      %s38 = ssub.s32 %s25, %s37
      %s39 = ssub.s32 %s26, %s33
      %s40 = sor.u32 %s38, %s39
      %p41 = scmp.eq.s32.totalorder %s40, 0
      %s43 = sadd.s32 %s42, 1
      %s44 = scalar_select %p41, %s42, %s43
      %p47 = pneg %p41
      %p48 = scmp.eq.s32.totalorder %s18, 1
      %p49 = por %p47, %p48
      %p50 = scmp.ne.s32.totalorder %s42, %s45
      %p51 = scmp.eq.s32.totalorder %s18, 0
      %p52 = por %p50, %p51
      %p53 = scmp.ne.s32.totalorder %s42, %s45
      %p54 = scmp.eq.s32.totalorder %s23, 1
      %p55 = por %p53, %p54
      %p56 = scmp.ne.s32.totalorder %s45, %s46
      %p57 = scmp.eq.s32.totalorder %s23, 0
      %p58 = por %p56, %p57
      %p59 = scmp.ne.s32.totalorder %s45, %s46
      %p60 = scmp.eq.s32.totalorder %s24, 1
      %p61 = por %p59, %p60
      %p63 = scmp.ne.s32.totalorder %s46, %s62
      %p64 = scmp.eq.s32.totalorder %s24, 0
      %p65 = por %p63, %p64
      %s66 = ssub.s32 %s25, %s37
      %s67 = ssub.s32 %s26, %s33
      %s68 = sor.u32 %s66, %s67
      %p69 = scmp.eq.s32.totalorder %s68, 0
      %s71 = sadd.s32 %s70, 1
      %s72 = scalar_select %p69, %s70, %s71
      %p75 = pneg %p69
      %p76 = scmp.eq.s32.totalorder %s18, 1
      %p77 = por %p75, %p76
      %p78 = scmp.ne.s32.totalorder %s70, %s73
      %p79 = scmp.eq.s32.totalorder %s18, 0
      %p80 = por %p78, %p79
      %p81 = scmp.ne.s32.totalorder %s70, %s73
      %p82 = scmp.eq.s32.totalorder %s23, 1
      %p83 = por %p81, %p82
      %p84 = scmp.ne.s32.totalorder %s73, %s74
      %p85 = scmp.eq.s32.totalorder %s23, 0
      %p86 = por %p84, %p85
      %p87 = scmp.ne.s32.totalorder %s73, %s74
      %p88 = scmp.eq.s32.totalorder %s24, 1
      %p89 = por %p87, %p88
      %p91 = scmp.ne.s32.totalorder %s74, %s90
      %p92 = scmp.eq.s32.totalorder %s24, 0
      %p93 = por %p91, %p92
      %s94 = ssub.s32 %s25, %s37
      %s95 = ssub.s32 %s26, %s33
      %s96 = sor.u32 %s94, %s95
      %p97 = scmp.eq.s32.totalorder %s96, 0
      %s99 = sadd.s32 %s98, 1
      %s100 = scalar_select %p97, %s98, %s99
      %p103 = pneg %p97
      %p104 = scmp.eq.s32.totalorder %s18, 1
      %p105 = por %p103, %p104
      %p106 = scmp.ne.s32.totalorder %s98, %s101
      %p107 = scmp.eq.s32.totalorder %s18, 0
      %p108 = por %p106, %p107
      %p109 = scmp.ne.s32.totalorder %s98, %s101
      %p110 = scmp.eq.s32.totalorder %s23, 1
      %p111 = por %p109, %p110
      %p112 = scmp.ne.s32.totalorder %s101, %s102
      %p113 = scmp.eq.s32.totalorder %s23, 0
      %p114 = por %p112, %p113
      %p115 = scmp.ne.s32.totalorder %s101, %s102
      %p116 = scmp.eq.s32.totalorder %s24, 1
      %p117 = por %p115, %p116
      %p119 = scmp.ne.s32.totalorder %s102, %s118
      %p120 = scmp.eq.s32.totalorder %s24, 0
      %p121 = por %p119, %p120
      %s122 = ssub.s32 %s25, %s37
      %p123 = scmp.eq.s32.totalorder %s122, 0
      %s125 = sadd.s32 %s124, 1
      %s126 = scalar_select %p123, %s124, %s125
      %p129 = pneg %p123
      %p130 = scmp.eq.s32.totalorder %s18, 1
      %p131 = por %p129, %p130
      %p132 = scmp.ne.s32.totalorder %s124, %s127
      %p133 = scmp.eq.s32.totalorder %s18, 0
      %p134 = por %p132, %p133
      %p135 = scmp.ne.s32.totalorder %s124, %s127
      %p136 = scmp.eq.s32.totalorder %s23, 1
      %p137 = por %p135, %p136
      %p138 = scmp.ne.s32.totalorder %s127, %s128
      %p139 = scmp.eq.s32.totalorder %s23, 0
      %p140 = por %p138, %p139
      %p141 = scmp.ne.s32.totalorder %s127, %s128
      %p142 = scmp.eq.s32.totalorder %s24, 1
      %p143 = por %p141, %p142
      %p145 = scmp.ne.s32.totalorder %s128, %s144
      %p146 = scmp.eq.s32.totalorder %s24, 0
      %p147 = por %p145, %p146
      %p148 = scmp.le.s32.totalorder 1, %s18
      %p149 = scmp.lt.s32.totalorder %s18, 3
      %p150 = pnand %p148, %p149
      %p151 = pneg %p150
      // Predicated region
      $region9: #{tpu_custom_call.1} parent=5 // pred_check
        _
      $region10: #{tpu_custom_call.1} parent=5 // pred_check_branch
        %153 = sbr.rel (%p150) target = $region12
      $region11: #{tpu_custom_call.1} parent=5 // pred_region
        %s154 = ssub.s32 %s18, 1
      $region12: #{tpu_custom_call.1} parent=5 // pred_fallthru
        _
      %p155 = scmp.lt.s32.totalorder %s18, 2
      // Predicated region
      $region13: #{tpu_custom_call.1} parent=5 // pred_check
        %p156 = pneg %p155
      $region14: #{tpu_custom_call.1} parent=5 // pred_check_branch
        %158 = sbr.rel (%p156) target = $region16
      $region15: #{tpu_custom_call.1} parent=5 // pred_region
        // Predicated region
        $region17: #{tpu_custom_call.1} parent=15 // pred_check
          %p159 = pneg %p52
        $region18: #{tpu_custom_call.1} parent=15 // pred_check_branch
          %161 = sbr.rel (%p159) target = $region20
        $region19: #{tpu_custom_call.1} parent=15 // pred_region
          %s162 = sand.u32 %s42, 1
          %s163 = scalar_lea.sflag [#allocation3], %s162
          %s164 = sand.u32 %s42, 1
          %s165 = smul.addr %s164, 640
          %s166 = scalar_lea.vmem [#allocation2], %s165
          %s167 = smul.u32 16, %s26
          %s169 = ssub.s32 10240, 10240
          %170 = vsyncadd %s163, %s169
          %s171 = smul.addr %s167, 5
          %s172 = smul.addr %s25, 80
          %s173 = sadd.s32 %s171, %s172
          %s174 = smul.addr %s173, 128
          %s175 = scalar_lea.hbm %s0, %s174
          %s176 = sshll.u32 %s166, 4
          %s177 = int_to_ptr.vmem [resolvable:$true] %s176
          %182 = dma.hbm_to_vmem [thread:$0]  %s175, 10240, %s177, %s163, 128, 128, 8
        $region20: #{tpu_custom_call.1} parent=15 // pred_fallthru
          _
        // Predicated region
        $region21: #{tpu_custom_call.1} parent=15 // pred_check
          %p183 = pneg %p80
        $region22: #{tpu_custom_call.1} parent=15 // pred_check_branch
          %185 = sbr.rel (%p183) target = $region24
        $region23: #{tpu_custom_call.1} parent=15 // pred_region
          %s186 = sand.u32 %s18, 1
          %s187 = scalar_lea.sflag [#allocation6], %s186
          %s188 = sand.u32 %s70, 1
          %s189 = smul.addr %s188, 16
          %s190 = scalar_lea.vmem [#allocation5], %s189
          %s191 = smul.u32 2, %s26
          %s193 = ssub.s32 256, 256
          %194 = vsyncadd %s187, %s193
          %s195 = smul.addr %s25, 2
          %s196 = sadd.s32 %s191, %s195
          %s197 = smul.addr %s196, 128
          %s198 = scalar_lea.hbm %s1, %s197
          %s199 = sshll.u32 %s190, 4
          %s200 = int_to_ptr.vmem [resolvable:$true] %s199
          %205 = dma.hbm_to_vmem [thread:$0]  %s198, 256, %s200, %s187, 128, 128, 8
        $region24: #{tpu_custom_call.1} parent=15 // pred_fallthru
          _
        // Predicated region
        $region25: #{tpu_custom_call.1} parent=15 // pred_check
          %p206 = pneg %p108
        $region26: #{tpu_custom_call.1} parent=15 // pred_check_branch
          %208 = sbr.rel (%p206) target = $region28
        $region27: #{tpu_custom_call.1} parent=15 // pred_region
          %s209 = sand.u32 %s18, 1
          %s210 = scalar_lea.sflag [#allocation6], %s209
          %s211 = sand.u32 %s98, 1
          %s212 = smul.addr %s211, 16
          %s213 = scalar_lea.vmem [#allocation7], %s212
          %s214 = smul.u32 2, %s26
          %s216 = ssub.s32 256, 256
          %217 = vsyncadd %s210, %s216
          %s218 = smul.addr %s25, 2
          %s219 = sadd.s32 %s214, %s218
          %s220 = smul.addr %s219, 128
          %s221 = scalar_lea.hbm %s2, %s220
          %s222 = sshll.u32 %s213, 4
          %s223 = int_to_ptr.vmem [resolvable:$true] %s222
          %228 = dma.hbm_to_vmem [thread:$0]  %s221, 256, %s223, %s210, 128, 128, 8
        $region28: #{tpu_custom_call.1} parent=15 // pred_fallthru
          _
      $region16: #{tpu_custom_call.1} parent=5 // pred_fallthru
        _
      %p229 = scmp.le.s32.totalorder 1, %s18
      %p230 = scmp.lt.s32.totalorder %s18, 3
      %p231 = pnand %p229, %p230
      %p232 = pneg %p231
      // Predicated region
      $region29: #{tpu_custom_call.1} parent=5 // pred_check
        _
      $region30: #{tpu_custom_call.1} parent=5 // pred_check_branch
        %234 = sbr.rel (%p231) target = $region32
      $region31: #{tpu_custom_call.1} parent=5 // pred_region
        %s235 = ssub.s32 %s18, 1
        %s236 = sand.u32 %s45, 1
        %s237 = scalar_lea.sflag [#allocation3], %s236
        %s238 = sand.u32 %s45, 1
        %s239 = smul.addr %s238, 640
        %s240 = scalar_lea.vmem [#allocation2], %s239
        // Predicated region
        $region33: #{tpu_custom_call.1} parent=31 // pred_check
          %p241 = pneg %p58
        $region34: #{tpu_custom_call.1} parent=31 // pred_check_branch
          %243 = sbr.rel (%p241) target = $region36
        $region35: #{tpu_custom_call.1} parent=31 // pred_region
          %244 = dma.done %s237, 10240
        $region36: #{tpu_custom_call.1} parent=31 // pred_fallthru
          _
        %s245 = sand.u32 %s23, 1
        %s246 = scalar_lea.sflag [#allocation6], %s245
        %s247 = sand.u32 %s73, 1
        %s248 = smul.addr %s247, 16
        %s249 = scalar_lea.vmem [#allocation5], %s248
        // Predicated region
        $region37: #{tpu_custom_call.1} parent=31 // pred_check
          %p250 = pneg %p86
        $region38: #{tpu_custom_call.1} parent=31 // pred_check_branch
          %252 = sbr.rel (%p250) target = $region40
        $region39: #{tpu_custom_call.1} parent=31 // pred_region
          %253 = dma.done %s246, 256
        $region40: #{tpu_custom_call.1} parent=31 // pred_fallthru
          _
        %s254 = sand.u32 %s23, 1
        %s255 = scalar_lea.sflag [#allocation6], %s254
        %s256 = sand.u32 %s101, 1
        %s257 = smul.addr %s256, 16
        %s258 = scalar_lea.vmem [#allocation7], %s257
        // Predicated region
        $region41: #{tpu_custom_call.1} parent=31 // pred_check
          %p259 = pneg %p114
        $region42: #{tpu_custom_call.1} parent=31 // pred_check_branch
          %261 = sbr.rel (%p259) target = $region44
        $region43: #{tpu_custom_call.1} parent=31 // pred_region
          %262 = dma.done %s255, 256
        $region44: #{tpu_custom_call.1} parent=31 // pred_fallthru
          _
        %s263 = sand.u32 %s45, 1
        %s264 = scalar_lea.sflag [#allocation3], %s263
        %s265 = sand.u32 %s45, 1
        %s266 = smul.addr %s265, 640
        %s267 = scalar_lea.vmem [#allocation2], %s266
        %p268 = pneg %p58
        %p269 = pneg %p55
        %s270 = sand.u32 %s23, 1
        %s271 = scalar_lea.sflag [#allocation6], %s270
        %s272 = sand.u32 %s73, 1
        %s273 = smul.addr %s272, 16
        %s274 = scalar_lea.vmem [#allocation5], %s273
        %p275 = pneg %p86
        %p276 = pneg %p83
        %s277 = sand.u32 %s23, 1
        %s278 = scalar_lea.sflag [#allocation6], %s277
        %s279 = sand.u32 %s101, 1
        %s280 = smul.addr %s279, 16
        %s281 = scalar_lea.vmem [#allocation7], %s280
        %p282 = pneg %p114
        %p283 = pneg %p111
        %p284 = pneg %p140
        %p285 = pneg %p137
        %s286 = sand.u32 %s127, 1
        %s287 = scalar_lea.sflag [#allocation4], %s286
        %s288 = sand.u32 %s127, 1
        %s289 = smul.addr %s288, 2
        %s290 = scalar_lea.vmem [#allocation8], %s289
        %s291 = smul.u32 16, %s28
        %s292 = smul.u32 2, %s28
        %s293 = smul.u32 2, %s28
        %v294 = vld [vmem:[%s240] sm:$0xff]
        %v295 = vld [vmem:[%s240 + $0x8] sm:$0xff]
        %v296 = vld [vmem:[%s240 + $0x10] sm:$0xff]
        %v297 = vld [vmem:[%s240 + $0x18] sm:$0xff]
        %v298 = vld [vmem:[%s240 + $0x20] sm:$0x3f]
        %v299 = vld [vmem:[%s240 + $0x28] sm:$0xff]
        %v300 = vld [vmem:[%s240 + $0x30] sm:$0xff]
        %v301 = vld [vmem:[%s240 + $0x38] sm:$0xff]
        %v302 = vld [vmem:[%s240 + $0x40] sm:$0xff]
        %v303 = vld [vmem:[%s240 + $0x48] sm:$0x3f]
        %v304 = vld [vmem:[%s240 + $0x50] sm:$0xff]
        %v305 = vld [vmem:[%s240 + $0x58] sm:$0xff]
        %v306 = vld [vmem:[%s240 + $0x60] sm:$0xff]
        %v307 = vld [vmem:[%s240 + $0x68] sm:$0xff]
        %v308 = vld [vmem:[%s240 + $0x70] sm:$0x3f]
        %v309 = vld [vmem:[%s240 + $0x78] sm:$0xff]
        %v310 = vld [vmem:[%s240 + $0x80] sm:$0xff]
        %v311 = vld [vmem:[%s240 + $0x88] sm:$0xff]
        %v312 = vld [vmem:[%s240 + $0x90] sm:$0xff]
        %v313 = vld [vmem:[%s240 + $0x98] sm:$0x3f]
        %v314 = vld [vmem:[%s240 + $0xa0] sm:$0xff]
        %v315 = vld [vmem:[%s240 + $0xa8] sm:$0xff]
        %v316 = vld [vmem:[%s240 + $0xb0] sm:$0xff]
        %v317 = vld [vmem:[%s240 + $0xb8] sm:$0xff]
        %v318 = vld [vmem:[%s240 + $0xc0] sm:$0x3f]
        %v319 = vld [vmem:[%s240 + $0xc8] sm:$0xff]
        %v320 = vld [vmem:[%s240 + $0xd0] sm:$0xff]
        %v321 = vld [vmem:[%s240 + $0xd8] sm:$0xff]
        %v322 = vld [vmem:[%s240 + $0xe0] sm:$0xff]
        %v323 = vld [vmem:[%s240 + $0xe8] sm:$0x3f]
        %v324 = vld [vmem:[%s240 + $0xf0] sm:$0xff]
        %v325 = vld [vmem:[%s240 + $0xf8] sm:$0xff]
        %v326 = vld [vmem:[%s240 + $0x100] sm:$0xff]
        %v327 = vld [vmem:[%s240 + $0x108] sm:$0xff]
        %v328 = vld [vmem:[%s240 + $0x110] sm:$0x3f]
        %v329 = vld [vmem:[%s240 + $0x118] sm:$0xff]
        %v330 = vld [vmem:[%s240 + $0x120] sm:$0xff]
        %v331 = vld [vmem:[%s240 + $0x128] sm:$0xff]
        %v332 = vld [vmem:[%s240 + $0x130] sm:$0xff]
        %v333 = vld [vmem:[%s240 + $0x138] sm:$0x3f]
        %v334 = vld [vmem:[%s240 + $0x140] sm:$0xff]
        %v335 = vld [vmem:[%s240 + $0x148] sm:$0xff]
        %v336 = vld [vmem:[%s240 + $0x150] sm:$0xff]
        %v337 = vld [vmem:[%s240 + $0x158] sm:$0xff]
        %v338 = vld [vmem:[%s240 + $0x160] sm:$0x3f]
        %v339 = vld [vmem:[%s240 + $0x168] sm:$0xff]
        %v340 = vld [vmem:[%s240 + $0x170] sm:$0xff]
        %v341 = vld [vmem:[%s240 + $0x178] sm:$0xff]
        %v342 = vld [vmem:[%s240 + $0x180] sm:$0xff]
        %v343 = vld [vmem:[%s240 + $0x188] sm:$0x3f]
        %v344 = vld [vmem:[%s240 + $0x190] sm:$0xff]
        %v345 = vld [vmem:[%s240 + $0x198] sm:$0xff]
        %v346 = vld [vmem:[%s240 + $0x1a0] sm:$0xff]
        %v347 = vld [vmem:[%s240 + $0x1a8] sm:$0xff]
        %v348 = vld [vmem:[%s240 + $0x1b0] sm:$0x3f]
        %v349 = vld [vmem:[%s240 + $0x1b8] sm:$0xff]
        %v350 = vld [vmem:[%s240 + $0x1c0] sm:$0xff]
        %v351 = vld [vmem:[%s240 + $0x1c8] sm:$0xff]
        %v352 = vld [vmem:[%s240 + $0x1d0] sm:$0xff]
        %v353 = vld [vmem:[%s240 + $0x1d8] sm:$0x3f]
        %v354 = vld [vmem:[%s240 + $0x1e0] sm:$0xff]
        %v355 = vld [vmem:[%s240 + $0x1e8] sm:$0xff]
        %v356 = vld [vmem:[%s240 + $0x1f0] sm:$0xff]
        %v357 = vld [vmem:[%s240 + $0x1f8] sm:$0xff]
        %v358 = vld [vmem:[%s240 + $0x200] sm:$0x3f]
        %v359 = vld [vmem:[%s240 + $0x208] sm:$0xff]
        %v360 = vld [vmem:[%s240 + $0x210] sm:$0xff]
        %v361 = vld [vmem:[%s240 + $0x218] sm:$0xff]
        %v362 = vld [vmem:[%s240 + $0x220] sm:$0xff]
        %v363 = vld [vmem:[%s240 + $0x228] sm:$0x3f]
        %v364 = vld [vmem:[%s240 + $0x230] sm:$0xff]
        %v365 = vld [vmem:[%s240 + $0x238] sm:$0xff]
        %v366 = vld [vmem:[%s240 + $0x240] sm:$0xff]
        %v367 = vld [vmem:[%s240 + $0x248] sm:$0xff]
        %v368 = vld [vmem:[%s240 + $0x250] sm:$0x3f]
        %v369 = vld [vmem:[%s240 + $0x258] sm:$0xff]
        %v370 = vld [vmem:[%s240 + $0x260] sm:$0xff]
        %v371 = vld [vmem:[%s240 + $0x268] sm:$0xff]
        %v372 = vld [vmem:[%s240 + $0x270] sm:$0xff]
        %v373 = vld [vmem:[%s240 + $0x278] sm:$0x3f]
        %v374 = vld [vmem:[%s249] sm:$0xff]
        %v375 = vld [vmem:[%s249 + $0x8] sm:$0xff]
        %v376 = vld [vmem:[%s258] sm:$0xff]
        %v377 = vld [vmem:[%s258 + $0x8] sm:$0xff]
        %v378 = vrsqrt.pop %v374
        %v379 = vmul.f32 %v374, %v378
        %vm380 = vcmp.eq.f32.partialorder %v374, inf
        %v381 = vsel %vm380, %v374, %v379
        %vm382 = vcmp.eq.f32.partialorder %v374, 0.0
        %v383 = vand.u32 %v374, 2147483648
        %v384 = vsel %vm382, %v383, %v381
        %v385 = vrsqrt.pop %v375
        %v386 = vmul.f32 %v375, %v385
        %vm387 = vcmp.eq.f32.partialorder %v375, inf
        %v388 = vsel %vm387, %v375, %v386
        %vm389 = vcmp.eq.f32.partialorder %v375, 0.0
        %v390 = vand.u32 %v375, 2147483648
        %v391 = vsel %vm389, %v390, %v388
        %v392 = vsub.f32 %v384, 2.0
        %v393 = vsub.f32 %v391, 2.0
        %v394 = vmul.f32 %v392, 0.94736844
        %v395 = vmul.f32 %v393, 0.94736844
        %v396 = vceil.f32 %v394
        %v397 = vceil.f32 %v395
        %v398 = vmax.f32 %v396, 0.0
        %v399 = vmax.f32 %v397, 0.0
        %v400 = vmin.f32 %v398, 37.0
        %v401 = vmin.f32 %v399, 37.0
        %v402 = vcvt.f32.s32.to.zero.pseudo %v400
        %v403 = vcvt.f32.s32.to.zero.pseudo %v401
        %vm404 = vcmask 130048
        %v405 = vsel %vm404, %v294, -inf
        %v406 = vsel %vm404, %v295, -inf
        %v407 = vmax.f32 %v405, %v406
        %v408 = vsel %vm404, %v296, -inf
        %v409 = vmax.f32 %v407, %v408
        %v410 = vsel %vm404, %v297, -inf
        %v411 = vmax.f32 %v409, %v410
        %vm412 = vcmask 128000
        %v413 = vsel %vm412, %v298, -inf
        %v414 = vmax.f32 %v411, %v413
        %v415 = vrot.slane %v414, 4
        %v416 = vmax.f32 %v414, %v415
        %v417 = vrot.slane %v416, 2
        %v418 = vmax.f32 %v416, %v417
        %v419 = vrot.slane %v418, 1
        %v420 = vmax.f32 %v418, %v419
        %v421 = vsel %vm404, %v299, -inf
        %v422 = vsel %vm404, %v300, -inf
        %v423 = vmax.f32 %v421, %v422
        %v424 = vsel %vm404, %v301, -inf
        %v425 = vmax.f32 %v423, %v424
        %v426 = vsel %vm404, %v302, -inf
        %v427 = vmax.f32 %v425, %v426
        %v428 = vsel %vm412, %v303, -inf
        %v429 = vmax.f32 %v427, %v428
        %v430 = vrot.slane %v429, 4
        %v431 = vmax.f32 %v429, %v430
        %v432 = vrot.slane %v431, 2
        %v433 = vmax.f32 %v431, %v432
        %v434 = vrot.slane %v433, 1
        %v435 = vmax.f32 %v433, %v434
        %v436 = vsel %vm404, %v304, -inf
        %v437 = vsel %vm404, %v305, -inf
        %v438 = vmax.f32 %v436, %v437
        %v439 = vsel %vm404, %v306, -inf
        %v440 = vmax.f32 %v438, %v439
        %v441 = vsel %vm404, %v307, -inf
        %v442 = vmax.f32 %v440, %v441
        %v443 = vsel %vm412, %v308, -inf
        %v444 = vmax.f32 %v442, %v443
        %v445 = vrot.slane %v444, 4
        %v446 = vmax.f32 %v444, %v445
        %v447 = vrot.slane %v446, 2
        %v448 = vmax.f32 %v446, %v447
        %v449 = vrot.slane %v448, 1
        %v450 = vmax.f32 %v448, %v449
        %v451 = vsel %vm404, %v309, -inf
        %v452 = vsel %vm404, %v310, -inf
        %v453 = vmax.f32 %v451, %v452
        %v454 = vsel %vm404, %v311, -inf
        %v455 = vmax.f32 %v453, %v454
        %v456 = vsel %vm404, %v312, -inf
        %v457 = vmax.f32 %v455, %v456
        %v458 = vsel %vm412, %v313, -inf
        %v459 = vmax.f32 %v457, %v458
        %v460 = vrot.slane %v459, 4
        %v461 = vmax.f32 %v459, %v460
        %v462 = vrot.slane %v461, 2
        %v463 = vmax.f32 %v461, %v462
        %v464 = vrot.slane %v463, 1
        %v465 = vmax.f32 %v463, %v464
        %v466 = vsel %vm404, %v314, -inf
        %v467 = vsel %vm404, %v315, -inf
        %v468 = vmax.f32 %v466, %v467
        %v469 = vsel %vm404, %v316, -inf
        %v470 = vmax.f32 %v468, %v469
        %v471 = vsel %vm404, %v317, -inf
        %v472 = vmax.f32 %v470, %v471
        %v473 = vsel %vm412, %v318, -inf
        %v474 = vmax.f32 %v472, %v473
        %v475 = vrot.slane %v474, 4
        %v476 = vmax.f32 %v474, %v475
        %v477 = vrot.slane %v476, 2
        %v478 = vmax.f32 %v476, %v477
        %v479 = vrot.slane %v478, 1
        %v480 = vmax.f32 %v478, %v479
        %v481 = vsel %vm404, %v319, -inf
        %v482 = vsel %vm404, %v320, -inf
        %v483 = vmax.f32 %v481, %v482
        %v484 = vsel %vm404, %v321, -inf
        %v485 = vmax.f32 %v483, %v484
        %v486 = vsel %vm404, %v322, -inf
        %v487 = vmax.f32 %v485, %v486
        %v488 = vsel %vm412, %v323, -inf
        %v489 = vmax.f32 %v487, %v488
        %v490 = vrot.slane %v489, 4
        %v491 = vmax.f32 %v489, %v490
        %v492 = vrot.slane %v491, 2
        %v493 = vmax.f32 %v491, %v492
        %v494 = vrot.slane %v493, 1
        %v495 = vmax.f32 %v493, %v494
        %v496 = vsel %vm404, %v324, -inf
        %v497 = vsel %vm404, %v325, -inf
        %v498 = vmax.f32 %v496, %v497
        %v499 = vsel %vm404, %v326, -inf
        %v500 = vmax.f32 %v498, %v499
        %v501 = vsel %vm404, %v327, -inf
        %v502 = vmax.f32 %v500, %v501
        %v503 = vsel %vm412, %v328, -inf
        %v504 = vmax.f32 %v502, %v503
        %v505 = vrot.slane %v504, 4
        %v506 = vmax.f32 %v504, %v505
        %v507 = vrot.slane %v506, 2
        %v508 = vmax.f32 %v506, %v507
        %v509 = vrot.slane %v508, 1
        %v510 = vmax.f32 %v508, %v509
        %v511 = vsel %vm404, %v329, -inf
        %v512 = vsel %vm404, %v330, -inf
        %v513 = vmax.f32 %v511, %v512
        %v514 = vsel %vm404, %v331, -inf
        %v515 = vmax.f32 %v513, %v514
        %v516 = vsel %vm404, %v332, -inf
        %v517 = vmax.f32 %v515, %v516
        %v518 = vsel %vm412, %v333, -inf
        %v519 = vmax.f32 %v517, %v518
        %v520 = vrot.slane %v519, 4
        %v521 = vmax.f32 %v519, %v520
        %v522 = vrot.slane %v521, 2
        %v523 = vmax.f32 %v521, %v522
        %v524 = vrot.slane %v523, 1
        %v525 = vmax.f32 %v523, %v524
        %v526 = vsel %vm404, %v334, -inf
        %v527 = vsel %vm404, %v335, -inf
        %v528 = vmax.f32 %v526, %v527
        %v529 = vsel %vm404, %v336, -inf
        %v530 = vmax.f32 %v528, %v529
        %v531 = vsel %vm404, %v337, -inf
        %v532 = vmax.f32 %v530, %v531
        %v533 = vsel %vm412, %v338, -inf
        %v534 = vmax.f32 %v532, %v533
        %v535 = vrot.slane %v534, 4
        %v536 = vmax.f32 %v534, %v535
        %v537 = vrot.slane %v536, 2
        %v538 = vmax.f32 %v536, %v537
        %v539 = vrot.slane %v538, 1
        %v540 = vmax.f32 %v538, %v539
        %v541 = vsel %vm404, %v339, -inf
        %v542 = vsel %vm404, %v340, -inf
        %v543 = vmax.f32 %v541, %v542
        %v544 = vsel %vm404, %v341, -inf
        %v545 = vmax.f32 %v543, %v544
        %v546 = vsel %vm404, %v342, -inf
        %v547 = vmax.f32 %v545, %v546
        %v548 = vsel %vm412, %v343, -inf
        %v549 = vmax.f32 %v547, %v548
        %v550 = vrot.slane %v549, 4
        %v551 = vmax.f32 %v549, %v550
        %v552 = vrot.slane %v551, 2
        %v553 = vmax.f32 %v551, %v552
        %v554 = vrot.slane %v553, 1
        %v555 = vmax.f32 %v553, %v554
        %v556 = vsel %vm404, %v344, -inf
        %v557 = vsel %vm404, %v345, -inf
        %v558 = vmax.f32 %v556, %v557
        %v559 = vsel %vm404, %v346, -inf
        %v560 = vmax.f32 %v558, %v559
        %v561 = vsel %vm404, %v347, -inf
        %v562 = vmax.f32 %v560, %v561
        %v563 = vsel %vm412, %v348, -inf
        %v564 = vmax.f32 %v562, %v563
        %v565 = vrot.slane %v564, 4
        %v566 = vmax.f32 %v564, %v565
        %v567 = vrot.slane %v566, 2
        %v568 = vmax.f32 %v566, %v567
        %v569 = vrot.slane %v568, 1
        %v570 = vmax.f32 %v568, %v569
        %v571 = vsel %vm404, %v349, -inf
        %v572 = vsel %vm404, %v350, -inf
        %v573 = vmax.f32 %v571, %v572
        %v574 = vsel %vm404, %v351, -inf
        %v575 = vmax.f32 %v573, %v574
        %v576 = vsel %vm404, %v352, -inf
        %v577 = vmax.f32 %v575, %v576
        %v578 = vsel %vm412, %v353, -inf
        %v579 = vmax.f32 %v577, %v578
        %v580 = vrot.slane %v579, 4
        %v581 = vmax.f32 %v579, %v580
        %v582 = vrot.slane %v581, 2
        %v583 = vmax.f32 %v581, %v582
        %v584 = vrot.slane %v583, 1
        %v585 = vmax.f32 %v583, %v584
        %v586 = vsel %vm404, %v354, -inf
        %v587 = vsel %vm404, %v355, -inf
        %v588 = vmax.f32 %v586, %v587
        %v589 = vsel %vm404, %v356, -inf
        %v590 = vmax.f32 %v588, %v589
        %v591 = vsel %vm404, %v357, -inf
        %v592 = vmax.f32 %v590, %v591
        %v593 = vsel %vm412, %v358, -inf
        %v594 = vmax.f32 %v592, %v593
        %v595 = vrot.slane %v594, 4
        %v596 = vmax.f32 %v594, %v595
        %v597 = vrot.slane %v596, 2
        %v598 = vmax.f32 %v596, %v597
        %v599 = vrot.slane %v598, 1
        %v600 = vmax.f32 %v598, %v599
        %v601 = vsel %vm404, %v359, -inf
        %v602 = vsel %vm404, %v360, -inf
        %v603 = vmax.f32 %v601, %v602
        %v604 = vsel %vm404, %v361, -inf
        %v605 = vmax.f32 %v603, %v604
        %v606 = vsel %vm404, %v362, -inf
        %v607 = vmax.f32 %v605, %v606
        %v608 = vsel %vm412, %v363, -inf
        %v609 = vmax.f32 %v607, %v608
        %v610 = vrot.slane %v609, 4
        %v611 = vmax.f32 %v609, %v610
        %v612 = vrot.slane %v611, 2
        %v613 = vmax.f32 %v611, %v612
        %v614 = vrot.slane %v613, 1
        %v615 = vmax.f32 %v613, %v614
        %v616 = vsel %vm404, %v364, -inf
        %v617 = vsel %vm404, %v365, -inf
        %v618 = vmax.f32 %v616, %v617
        %v619 = vsel %vm404, %v366, -inf
        %v620 = vmax.f32 %v618, %v619
        %v621 = vsel %vm404, %v367, -inf
        %v622 = vmax.f32 %v620, %v621
        %v623 = vsel %vm412, %v368, -inf
        %v624 = vmax.f32 %v622, %v623
        %v625 = vrot.slane %v624, 4
        %v626 = vmax.f32 %v624, %v625
        %v627 = vrot.slane %v626, 2
        %v628 = vmax.f32 %v626, %v627
        %v629 = vrot.slane %v628, 1
        %v630 = vmax.f32 %v628, %v629
        %v631 = vsel %vm404, %v369, -inf
        %v632 = vsel %vm404, %v370, -inf
        %v633 = vmax.f32 %v631, %v632
        %v634 = vsel %vm404, %v371, -inf
        %v635 = vmax.f32 %v633, %v634
        %v636 = vsel %vm404, %v372, -inf
        %v637 = vmax.f32 %v635, %v636
        %v638 = vsel %vm412, %v373, -inf
        %v639 = vmax.f32 %v637, %v638
        %v640 = vrot.slane %v639, 4
        %v641 = vmax.f32 %v639, %v640
        %v642 = vrot.slane %v641, 2
        %v643 = vmax.f32 %v641, %v642
        %v644 = vrot.slane %v643, 1
        %v645 = vmax.f32 %v643, %v644
        %v646 = vsub.f32 %v294, %v420
        %v647 = vsub.f32 %v295, %v420
        %v648 = vsub.f32 %v296, %v420
        %v649 = vsub.f32 %v297, %v420
        %v650 = vsub.f32 %v298, %v420
        %v651 = vsub.f32 %v299, %v435
        %v652 = vsub.f32 %v300, %v435
        %v653 = vsub.f32 %v301, %v435
        %v654 = vsub.f32 %v302, %v435
        %v655 = vsub.f32 %v303, %v435
        %v656 = vsub.f32 %v304, %v450
        %v657 = vsub.f32 %v305, %v450
        %v658 = vsub.f32 %v306, %v450
        %v659 = vsub.f32 %v307, %v450
        %v660 = vsub.f32 %v308, %v450
        %v661 = vsub.f32 %v309, %v465
        %v662 = vsub.f32 %v310, %v465
        %v663 = vsub.f32 %v311, %v465
        %v664 = vsub.f32 %v312, %v465
        %v665 = vsub.f32 %v313, %v465
        %v666 = vsub.f32 %v314, %v480
        %v667 = vsub.f32 %v315, %v480
        %v668 = vsub.f32 %v316, %v480
        %v669 = vsub.f32 %v317, %v480
        %v670 = vsub.f32 %v318, %v480
        %v671 = vsub.f32 %v319, %v495
        %v672 = vsub.f32 %v320, %v495
        %v673 = vsub.f32 %v321, %v495
        %v674 = vsub.f32 %v322, %v495
        %v675 = vsub.f32 %v323, %v495
        %v676 = vsub.f32 %v324, %v510
        %v677 = vsub.f32 %v325, %v510
        %v678 = vsub.f32 %v326, %v510
        %v679 = vsub.f32 %v327, %v510
        %v680 = vsub.f32 %v328, %v510
        %v681 = vsub.f32 %v329, %v525
        %v682 = vsub.f32 %v330, %v525
        %v683 = vsub.f32 %v331, %v525
        %v684 = vsub.f32 %v332, %v525
        %v685 = vsub.f32 %v333, %v525
        %v686 = vsub.f32 %v334, %v540
        %v687 = vsub.f32 %v335, %v540
        %v688 = vsub.f32 %v336, %v540
        %v689 = vsub.f32 %v337, %v540
        %v690 = vsub.f32 %v338, %v540
        %v691 = vsub.f32 %v339, %v555
        %v692 = vsub.f32 %v340, %v555
        %v693 = vsub.f32 %v341, %v555
        %v694 = vsub.f32 %v342, %v555
        %v695 = vsub.f32 %v343, %v555
        %v696 = vsub.f32 %v344, %v570
        %v697 = vsub.f32 %v345, %v570
        %v698 = vsub.f32 %v346, %v570
        %v699 = vsub.f32 %v347, %v570
        %v700 = vsub.f32 %v348, %v570
        %v701 = vsub.f32 %v349, %v585
        %v702 = vsub.f32 %v350, %v585
        %v703 = vsub.f32 %v351, %v585
        %v704 = vsub.f32 %v352, %v585
        %v705 = vsub.f32 %v353, %v585
        %v706 = vsub.f32 %v354, %v600
        %v707 = vsub.f32 %v355, %v600
        %v708 = vsub.f32 %v356, %v600
        %v709 = vsub.f32 %v357, %v600
        %v710 = vsub.f32 %v358, %v600
        %v711 = vsub.f32 %v359, %v615
        %v712 = vsub.f32 %v360, %v615
        %v713 = vsub.f32 %v361, %v615
        %v714 = vsub.f32 %v362, %v615
        %v715 = vsub.f32 %v363, %v615
        %v716 = vsub.f32 %v364, %v630
        %v717 = vsub.f32 %v365, %v630
        %v718 = vsub.f32 %v366, %v630
        %v719 = vsub.f32 %v367, %v630
        %v720 = vsub.f32 %v368, %v630
        %v721 = vsub.f32 %v369, %v645
        %v722 = vsub.f32 %v370, %v645
        %v723 = vsub.f32 %v371, %v645
        %v724 = vsub.f32 %v372, %v645
        %v725 = vsub.f32 %v373, %v645
        %v726 = vmul.f32 %v646, 1.442695
        %v727 = vpow.pop %v726
        %v728 = vmul.f32 %v647, 1.442695
        %v729 = vpow.pop %v728
        %v730 = vmul.f32 %v648, 1.442695
        %v731 = vpow.pop %v730
        %v732 = vmul.f32 %v649, 1.442695
        %v733 = vpow.pop %v732
        %v734 = vmul.f32 %v650, 1.442695
        %v735 = vpow.pop %v734
        %v736 = vmul.f32 %v651, 1.442695
        %v737 = vpow.pop %v736
        %v738 = vmul.f32 %v652, 1.442695
        %v739 = vpow.pop %v738
        %v740 = vmul.f32 %v653, 1.442695
        %v741 = vpow.pop %v740
        %v742 = vmul.f32 %v654, 1.442695
        %v743 = vpow.pop %v742
        %v744 = vmul.f32 %v655, 1.442695
        %v745 = vpow.pop %v744
        %v746 = vmul.f32 %v656, 1.442695
        %v747 = vpow.pop %v746
        %v748 = vmul.f32 %v657, 1.442695
        %v749 = vpow.pop %v748
        %v750 = vmul.f32 %v658, 1.442695
        %v751 = vpow.pop %v750
        %v752 = vmul.f32 %v659, 1.442695
        %v753 = vpow.pop %v752
        %v754 = vmul.f32 %v660, 1.442695
        %v755 = vpow.pop %v754
        %v756 = vmul.f32 %v661, 1.442695
        %v757 = vpow.pop %v756
        %v758 = vmul.f32 %v662, 1.442695
        %v759 = vpow.pop %v758
        %v760 = vmul.f32 %v663, 1.442695
        %v761 = vpow.pop %v760
        %v762 = vmul.f32 %v664, 1.442695
        %v763 = vpow.pop %v762
        %v764 = vmul.f32 %v665, 1.442695
        %v765 = vpow.pop %v764
        %v766 = vmul.f32 %v666, 1.442695
        %v767 = vpow.pop %v766
        %v768 = vmul.f32 %v667, 1.442695
        %v769 = vpow.pop %v768
        %v770 = vmul.f32 %v668, 1.442695
        %v771 = vpow.pop %v770
        %v772 = vmul.f32 %v669, 1.442695
        %v773 = vpow.pop %v772
        %v774 = vmul.f32 %v670, 1.442695
        %v775 = vpow.pop %v774
        %v776 = vmul.f32 %v671, 1.442695
        %v777 = vpow.pop %v776
        %v778 = vmul.f32 %v672, 1.442695
        %v779 = vpow.pop %v778
        %v780 = vmul.f32 %v673, 1.442695
        %v781 = vpow.pop %v780
        %v782 = vmul.f32 %v674, 1.442695
        %v783 = vpow.pop %v782
        %v784 = vmul.f32 %v675, 1.442695
        %v785 = vpow.pop %v784
        %v786 = vmul.f32 %v676, 1.442695
        %v787 = vpow.pop %v786
        %v788 = vmul.f32 %v677, 1.442695
        %v789 = vpow.pop %v788
        %v790 = vmul.f32 %v678, 1.442695
        %v791 = vpow.pop %v790
        %v792 = vmul.f32 %v679, 1.442695
        %v793 = vpow.pop %v792
        %v794 = vmul.f32 %v680, 1.442695
        %v795 = vpow.pop %v794
        %v796 = vmul.f32 %v681, 1.442695
        %v797 = vpow.pop %v796
        %v798 = vmul.f32 %v682, 1.442695
        %v799 = vpow.pop %v798
        %v800 = vmul.f32 %v683, 1.442695
        %v801 = vpow.pop %v800
        %v802 = vmul.f32 %v684, 1.442695
        %v803 = vpow.pop %v802
        %v804 = vmul.f32 %v685, 1.442695
        %v805 = vpow.pop %v804
        %v806 = vmul.f32 %v686, 1.442695
        %v807 = vpow.pop %v806
        %v808 = vmul.f32 %v687, 1.442695
        %v809 = vpow.pop %v808
        %v810 = vmul.f32 %v688, 1.442695
        %v811 = vpow.pop %v810
        %v812 = vmul.f32 %v689, 1.442695
        %v813 = vpow.pop %v812
        %v814 = vmul.f32 %v690, 1.442695
        %v815 = vpow.pop %v814
        %v816 = vmul.f32 %v691, 1.442695
        %v817 = vpow.pop %v816
        %v818 = vmul.f32 %v692, 1.442695
        %v819 = vpow.pop %v818
        %v820 = vmul.f32 %v693, 1.442695
        %v821 = vpow.pop %v820
        %v822 = vmul.f32 %v694, 1.442695
        %v823 = vpow.pop %v822
        %v824 = vmul.f32 %v695, 1.442695
        %v825 = vpow.pop %v824
        %v826 = vmul.f32 %v696, 1.442695
        %v827 = vpow.pop %v826
        %v828 = vmul.f32 %v697, 1.442695
        %v829 = vpow.pop %v828
        %v830 = vmul.f32 %v698, 1.442695
        %v831 = vpow.pop %v830
        %v832 = vmul.f32 %v699, 1.442695
        %v833 = vpow.pop %v832
        %v834 = vmul.f32 %v700, 1.442695
        %v835 = vpow.pop %v834
        %v836 = vmul.f32 %v701, 1.442695
        %v837 = vpow.pop %v836
        %v838 = vmul.f32 %v702, 1.442695
        %v839 = vpow.pop %v838
        %v840 = vmul.f32 %v703, 1.442695
        %v841 = vpow.pop %v840
        %v842 = vmul.f32 %v704, 1.442695
        %v843 = vpow.pop %v842
        %v844 = vmul.f32 %v705, 1.442695
        %v845 = vpow.pop %v844
        %v846 = vmul.f32 %v706, 1.442695
        %v847 = vpow.pop %v846
        %v848 = vmul.f32 %v707, 1.442695
        %v849 = vpow.pop %v848
        %v850 = vmul.f32 %v708, 1.442695
        %v851 = vpow.pop %v850
        %v852 = vmul.f32 %v709, 1.442695
        %v853 = vpow.pop %v852
        %v854 = vmul.f32 %v710, 1.442695
        %v855 = vpow.pop %v854
        %v856 = vmul.f32 %v711, 1.442695
        %v857 = vpow.pop %v856
        %v858 = vmul.f32 %v712, 1.442695
        %v859 = vpow.pop %v858
        %v860 = vmul.f32 %v713, 1.442695
        %v861 = vpow.pop %v860
        %v862 = vmul.f32 %v714, 1.442695
        %v863 = vpow.pop %v862
        %v864 = vmul.f32 %v715, 1.442695
        %v865 = vpow.pop %v864
        %v866 = vmul.f32 %v716, 1.442695
        %v867 = vpow.pop %v866
        %v868 = vmul.f32 %v717, 1.442695
        %v869 = vpow.pop %v868
        %v870 = vmul.f32 %v718, 1.442695
        %v871 = vpow.pop %v870
        %v872 = vmul.f32 %v719, 1.442695
        %v873 = vpow.pop %v872
        %v874 = vmul.f32 %v720, 1.442695
        %v875 = vpow.pop %v874
        %v876 = vmul.f32 %v721, 1.442695
        %v877 = vpow.pop %v876
        %v878 = vmul.f32 %v722, 1.442695
        %v879 = vpow.pop %v878
        %v880 = vmul.f32 %v723, 1.442695
        %v881 = vpow.pop %v880
        %v882 = vmul.f32 %v724, 1.442695
        %v883 = vpow.pop %v882
        %v884 = vmul.f32 %v725, 1.442695
        %v885 = vpow.pop %v884
        %v886 = vsel %vm404, %v727, 0.0
        %v887 = vsel %vm404, %v729, 0.0
        %v888 = vadd.f32 %v886, %v887
        %v889 = vsel %vm404, %v731, 0.0
        %v890 = vadd.f32 %v888, %v889
        %v891 = vsel %vm404, %v733, 0.0
        %v892 = vadd.f32 %v890, %v891
        %v893 = vsel %vm412, %v735, 0.0
        %v894 = vadd.f32 %v892, %v893
        %v895 = vrot.slane %v894, 4
        %v896 = vadd.f32 %v894, %v895
        %v897 = vrot.slane %v896, 2
        %v898 = vadd.f32 %v896, %v897
        %v899 = vrot.slane %v898, 1
        %v900 = vadd.f32 %v898, %v899
        %v901 = vsel %vm404, %v737, 0.0
        %v902 = vsel %vm404, %v739, 0.0
        %v903 = vadd.f32 %v901, %v902
        %v904 = vsel %vm404, %v741, 0.0
        %v905 = vadd.f32 %v903, %v904
        %v906 = vsel %vm404, %v743, 0.0
        %v907 = vadd.f32 %v905, %v906
        %v908 = vsel %vm412, %v745, 0.0
        %v909 = vadd.f32 %v907, %v908
        %v910 = vrot.slane %v909, 4
        %v911 = vadd.f32 %v909, %v910
        %v912 = vrot.slane %v911, 2
        %v913 = vadd.f32 %v911, %v912
        %v914 = vrot.slane %v913, 1
        %v915 = vadd.f32 %v913, %v914
        %v916 = vsel %vm404, %v747, 0.0
        %v917 = vsel %vm404, %v749, 0.0
        %v918 = vadd.f32 %v916, %v917
        %v919 = vsel %vm404, %v751, 0.0
        %v920 = vadd.f32 %v918, %v919
        %v921 = vsel %vm404, %v753, 0.0
        %v922 = vadd.f32 %v920, %v921
        %v923 = vsel %vm412, %v755, 0.0
        %v924 = vadd.f32 %v922, %v923
        %v925 = vrot.slane %v924, 4
        %v926 = vadd.f32 %v924, %v925
        %v927 = vrot.slane %v926, 2
        %v928 = vadd.f32 %v926, %v927
        %v929 = vrot.slane %v928, 1
        %v930 = vadd.f32 %v928, %v929
        %v931 = vsel %vm404, %v757, 0.0
        %v932 = vsel %vm404, %v759, 0.0
        %v933 = vadd.f32 %v931, %v932
        %v934 = vsel %vm404, %v761, 0.0
        %v935 = vadd.f32 %v933, %v934
        %v936 = vsel %vm404, %v763, 0.0
        %v937 = vadd.f32 %v935, %v936
        %v938 = vsel %vm412, %v765, 0.0
        %v939 = vadd.f32 %v937, %v938
        %v940 = vrot.slane %v939, 4
        %v941 = vadd.f32 %v939, %v940
        %v942 = vrot.slane %v941, 2
        %v943 = vadd.f32 %v941, %v942
        %v944 = vrot.slane %v943, 1
        %v945 = vadd.f32 %v943, %v944
        %v946 = vsel %vm404, %v767, 0.0
        %v947 = vsel %vm404, %v769, 0.0
        %v948 = vadd.f32 %v946, %v947
        %v949 = vsel %vm404, %v771, 0.0
        %v950 = vadd.f32 %v948, %v949
        %v951 = vsel %vm404, %v773, 0.0
        %v952 = vadd.f32 %v950, %v951
        %v953 = vsel %vm412, %v775, 0.0
        %v954 = vadd.f32 %v952, %v953
        %v955 = vrot.slane %v954, 4
        %v956 = vadd.f32 %v954, %v955
        %v957 = vrot.slane %v956, 2
        %v958 = vadd.f32 %v956, %v957
        %v959 = vrot.slane %v958, 1
        %v960 = vadd.f32 %v958, %v959
        %v961 = vsel %vm404, %v777, 0.0
        %v962 = vsel %vm404, %v779, 0.0
        %v963 = vadd.f32 %v961, %v962
        %v964 = vsel %vm404, %v781, 0.0
        %v965 = vadd.f32 %v963, %v964
        %v966 = vsel %vm404, %v783, 0.0
        %v967 = vadd.f32 %v965, %v966
        %v968 = vsel %vm412, %v785, 0.0
        %v969 = vadd.f32 %v967, %v968
        %v970 = vrot.slane %v969, 4
        %v971 = vadd.f32 %v969, %v970
        %v972 = vrot.slane %v971, 2
        %v973 = vadd.f32 %v971, %v972
        %v974 = vrot.slane %v973, 1
        %v975 = vadd.f32 %v973, %v974
        %v976 = vsel %vm404, %v787, 0.0
        %v977 = vsel %vm404, %v789, 0.0
        %v978 = vadd.f32 %v976, %v977
        %v979 = vsel %vm404, %v791, 0.0
        %v980 = vadd.f32 %v978, %v979
        %v981 = vsel %vm404, %v793, 0.0
        %v982 = vadd.f32 %v980, %v981
        %v983 = vsel %vm412, %v795, 0.0
        %v984 = vadd.f32 %v982, %v983
        %v985 = vrot.slane %v984, 4
        %v986 = vadd.f32 %v984, %v985
        %v987 = vrot.slane %v986, 2
        %v988 = vadd.f32 %v986, %v987
        %v989 = vrot.slane %v988, 1
        %v990 = vadd.f32 %v988, %v989
        %v991 = vsel %vm404, %v797, 0.0
        %v992 = vsel %vm404, %v799, 0.0
        %v993 = vadd.f32 %v991, %v992
        %v994 = vsel %vm404, %v801, 0.0
        %v995 = vadd.f32 %v993, %v994
        %v996 = vsel %vm404, %v803, 0.0
        %v997 = vadd.f32 %v995, %v996
        %v998 = vsel %vm412, %v805, 0.0
        %v999 = vadd.f32 %v997, %v998
        %v1000 = vrot.slane %v999, 4
        %v1001 = vadd.f32 %v999, %v1000
        %v1002 = vrot.slane %v1001, 2
        %v1003 = vadd.f32 %v1001, %v1002
        %v1004 = vrot.slane %v1003, 1
        %v1005 = vadd.f32 %v1003, %v1004
        %v1006 = vsel %vm404, %v807, 0.0
        %v1007 = vsel %vm404, %v809, 0.0
        %v1008 = vadd.f32 %v1006, %v1007
        %v1009 = vsel %vm404, %v811, 0.0
        %v1010 = vadd.f32 %v1008, %v1009
        %v1011 = vsel %vm404, %v813, 0.0
        %v1012 = vadd.f32 %v1010, %v1011
        %v1013 = vsel %vm412, %v815, 0.0
        %v1014 = vadd.f32 %v1012, %v1013
        %v1015 = vrot.slane %v1014, 4
        %v1016 = vadd.f32 %v1014, %v1015
        %v1017 = vrot.slane %v1016, 2
        %v1018 = vadd.f32 %v1016, %v1017
        %v1019 = vrot.slane %v1018, 1
        %v1020 = vadd.f32 %v1018, %v1019
        %v1021 = vsel %vm404, %v817, 0.0
        %v1022 = vsel %vm404, %v819, 0.0
        %v1023 = vadd.f32 %v1021, %v1022
        %v1024 = vsel %vm404, %v821, 0.0
        %v1025 = vadd.f32 %v1023, %v1024
        %v1026 = vsel %vm404, %v823, 0.0
        %v1027 = vadd.f32 %v1025, %v1026
        %v1028 = vsel %vm412, %v825, 0.0
        %v1029 = vadd.f32 %v1027, %v1028
        %v1030 = vrot.slane %v1029, 4
        %v1031 = vadd.f32 %v1029, %v1030
        %v1032 = vrot.slane %v1031, 2
        %v1033 = vadd.f32 %v1031, %v1032
        %v1034 = vrot.slane %v1033, 1
        %v1035 = vadd.f32 %v1033, %v1034
        %v1036 = vsel %vm404, %v827, 0.0
        %v1037 = vsel %vm404, %v829, 0.0
        %v1038 = vadd.f32 %v1036, %v1037
        %v1039 = vsel %vm404, %v831, 0.0
        %v1040 = vadd.f32 %v1038, %v1039
        %v1041 = vsel %vm404, %v833, 0.0
        %v1042 = vadd.f32 %v1040, %v1041
        %v1043 = vsel %vm412, %v835, 0.0
        %v1044 = vadd.f32 %v1042, %v1043
        %v1045 = vrot.slane %v1044, 4
        %v1046 = vadd.f32 %v1044, %v1045
        %v1047 = vrot.slane %v1046, 2
        %v1048 = vadd.f32 %v1046, %v1047
        %v1049 = vrot.slane %v1048, 1
        %v1050 = vadd.f32 %v1048, %v1049
        %v1051 = vsel %vm404, %v837, 0.0
        %v1052 = vsel %vm404, %v839, 0.0
        %v1053 = vadd.f32 %v1051, %v1052
        %v1054 = vsel %vm404, %v841, 0.0
        %v1055 = vadd.f32 %v1053, %v1054
        %v1056 = vsel %vm404, %v843, 0.0
        %v1057 = vadd.f32 %v1055, %v1056
        %v1058 = vsel %vm412, %v845, 0.0
        %v1059 = vadd.f32 %v1057, %v1058
        %v1060 = vrot.slane %v1059, 4
        %v1061 = vadd.f32 %v1059, %v1060
        %v1062 = vrot.slane %v1061, 2
        %v1063 = vadd.f32 %v1061, %v1062
        %v1064 = vrot.slane %v1063, 1
        %v1065 = vadd.f32 %v1063, %v1064
        %v1066 = vsel %vm404, %v847, 0.0
        %v1067 = vsel %vm404, %v849, 0.0
        %v1068 = vadd.f32 %v1066, %v1067
        %v1069 = vsel %vm404, %v851, 0.0
        %v1070 = vadd.f32 %v1068, %v1069
        %v1071 = vsel %vm404, %v853, 0.0
        %v1072 = vadd.f32 %v1070, %v1071
        %v1073 = vsel %vm412, %v855, 0.0
        %v1074 = vadd.f32 %v1072, %v1073
        %v1075 = vrot.slane %v1074, 4
        %v1076 = vadd.f32 %v1074, %v1075
        %v1077 = vrot.slane %v1076, 2
        %v1078 = vadd.f32 %v1076, %v1077
        %v1079 = vrot.slane %v1078, 1
        %v1080 = vadd.f32 %v1078, %v1079
        %v1081 = vsel %vm404, %v857, 0.0
        %v1082 = vsel %vm404, %v859, 0.0
        %v1083 = vadd.f32 %v1081, %v1082
        %v1084 = vsel %vm404, %v861, 0.0
        %v1085 = vadd.f32 %v1083, %v1084
        %v1086 = vsel %vm404, %v863, 0.0
        %v1087 = vadd.f32 %v1085, %v1086
        %v1088 = vsel %vm412, %v865, 0.0
        %v1089 = vadd.f32 %v1087, %v1088
        %v1090 = vrot.slane %v1089, 4
        %v1091 = vadd.f32 %v1089, %v1090
        %v1092 = vrot.slane %v1091, 2
        %v1093 = vadd.f32 %v1091, %v1092
        %v1094 = vrot.slane %v1093, 1
        %v1095 = vadd.f32 %v1093, %v1094
        %v1096 = vsel %vm404, %v867, 0.0
        %v1097 = vsel %vm404, %v869, 0.0
        %v1098 = vadd.f32 %v1096, %v1097
        %v1099 = vsel %vm404, %v871, 0.0
        %v1100 = vadd.f32 %v1098, %v1099
        %v1101 = vsel %vm404, %v873, 0.0
        %v1102 = vadd.f32 %v1100, %v1101
        %v1103 = vsel %vm412, %v875, 0.0
        %v1104 = vadd.f32 %v1102, %v1103
        %v1105 = vrot.slane %v1104, 4
        %v1106 = vadd.f32 %v1104, %v1105
        %v1107 = vrot.slane %v1106, 2
        %v1108 = vadd.f32 %v1106, %v1107
        %v1109 = vrot.slane %v1108, 1
        %v1110 = vadd.f32 %v1108, %v1109
        %v1111 = vsel %vm404, %v877, 0.0
        %v1112 = vsel %vm404, %v879, 0.0
        %v1113 = vadd.f32 %v1111, %v1112
        %v1114 = vsel %vm404, %v881, 0.0
        %v1115 = vadd.f32 %v1113, %v1114
        %v1116 = vsel %vm404, %v883, 0.0
        %v1117 = vadd.f32 %v1115, %v1116
        %v1118 = vsel %vm412, %v885, 0.0
        %v1119 = vadd.f32 %v1117, %v1118
        %v1120 = vrot.slane %v1119, 4
        %v1121 = vadd.f32 %v1119, %v1120
        %v1122 = vrot.slane %v1121, 2
        %v1123 = vadd.f32 %v1121, %v1122
        %v1124 = vrot.slane %v1123, 1
        %v1125 = vadd.f32 %v1123, %v1124
        %v1126 = vlog2.pop %v900
        %v1127 = vmul.f32 %v1126, 0.6931472
        %v1128 = vlog2.pop %v915
        %v1129 = vmul.f32 %v1128, 0.6931472
        %v1130 = vlog2.pop %v930
        %v1131 = vmul.f32 %v1130, 0.6931472
        %v1132 = vlog2.pop %v945
        %v1133 = vmul.f32 %v1132, 0.6931472
        %v1134 = vlog2.pop %v960
        %v1135 = vmul.f32 %v1134, 0.6931472
        %v1136 = vlog2.pop %v975
        %v1137 = vmul.f32 %v1136, 0.6931472
        %v1138 = vlog2.pop %v990
        %v1139 = vmul.f32 %v1138, 0.6931472
        %v1140 = vlog2.pop %v1005
        %v1141 = vmul.f32 %v1140, 0.6931472
        %v1142 = vlog2.pop %v1020
        %v1143 = vmul.f32 %v1142, 0.6931472
        %v1144 = vlog2.pop %v1035
        %v1145 = vmul.f32 %v1144, 0.6931472
        %v1146 = vlog2.pop %v1050
        %v1147 = vmul.f32 %v1146, 0.6931472
        %v1148 = vlog2.pop %v1065
        %v1149 = vmul.f32 %v1148, 0.6931472
        %v1150 = vlog2.pop %v1080
        %v1151 = vmul.f32 %v1150, 0.6931472
        %v1152 = vlog2.pop %v1095
        %v1153 = vmul.f32 %v1152, 0.6931472
        %v1154 = vlog2.pop %v1110
        %v1155 = vmul.f32 %v1154, 0.6931472
        %v1156 = vlog2.pop %v1125
        %v1157 = vmul.f32 %v1156, 0.6931472
        %v1158 = vlaneseq
        %v1159 = vshrl.u32 %v1158, 7
        %v1160 = vadd.s32 %v1159, 8
        %v1161 = vadd.s32 %v1159, 16
        %v1162 = vadd.s32 %v1159, 24
        %v1163 = vadd.s32 %v1159, 32
        %v1164 = vcombine.high %v402, %v402
        %v1166 = vunpack.c.l.s4 1966171168
        %v1167 = vunpack.c.0.s8 %v1166
        %v1168 = vlaneseq
        %v1169 = vshrl.u32 %v1168, 7
        %v1170 = vsub.s32 %v1167, %v1169
        %v1171 = vrot.slane %v402, %v1170
        %v1173 = vunpack.c.l.s4 1966171168
        %v1174 = vunpack.c.0.s8 %v1173
        %v1175 = vlaneseq
        %v1176 = vshrl.u32 %v1175, 7
        %v1177 = vsub.s32 %v1174, %v1176
        %v1178 = vrot.slane %v1164, %v1177
        %v1179 = vcombine.high %v1171, %v1171
        %v1180 = vcombine.high %v1178, %v1178
        %v1182 = vunpack.c.l.s4 1966171168
        %v1183 = vunpack.c.0.s8 %v1182
        %v1184 = vlaneseq
        %v1185 = vshrl.u32 %v1184, 7
        %v1186 = vsub.s32 %v1183, %v1185
        %v1187 = vrot.slane %v1171, %v1186
        %v1189 = vunpack.c.l.s4 1966171168
        %v1190 = vunpack.c.0.s8 %v1189
        %v1191 = vlaneseq
        %v1192 = vshrl.u32 %v1191, 7
        %v1193 = vsub.s32 %v1190, %v1192
        %v1194 = vrot.slane %v1178, %v1193
        %v1196 = vunpack.c.l.s4 1966171168
        %v1197 = vunpack.c.0.s8 %v1196
        %v1198 = vlaneseq
        %v1199 = vshrl.u32 %v1198, 7
        %v1200 = vsub.s32 %v1197, %v1199
        %v1201 = vrot.slane %v1179, %v1200
        %v1203 = vunpack.c.l.s4 1966171168
        %v1204 = vunpack.c.0.s8 %v1203
        %v1205 = vlaneseq
        %v1206 = vshrl.u32 %v1205, 7
        %v1207 = vsub.s32 %v1204, %v1206
        %v1208 = vrot.slane %v1180, %v1207
        %v1209 = vcombine.high %v1187, %v1187
        %v1210 = vcombine.high %v1194, %v1194
        %v1211 = vcombine.high %v1201, %v1201
        %v1212 = vcombine.high %v1208, %v1208
        %v1213 = vcombine.high %v403, %v403
        %v1215 = vunpack.c.l.s4 1966171168
        %v1216 = vunpack.c.0.s8 %v1215
        %v1217 = vlaneseq
        %v1218 = vshrl.u32 %v1217, 7
        %v1219 = vsub.s32 %v1216, %v1218
        %v1220 = vrot.slane %v403, %v1219
        %v1222 = vunpack.c.l.s4 1966171168
        %v1223 = vunpack.c.0.s8 %v1222
        %v1224 = vlaneseq
        %v1225 = vshrl.u32 %v1224, 7
        %v1226 = vsub.s32 %v1223, %v1225
        %v1227 = vrot.slane %v1213, %v1226
        %v1228 = vcombine.high %v1220, %v1220
        %v1229 = vcombine.high %v1227, %v1227
        %v1231 = vunpack.c.l.s4 1966171168
        %v1232 = vunpack.c.0.s8 %v1231
        %v1233 = vlaneseq
        %v1234 = vshrl.u32 %v1233, 7
        %v1235 = vsub.s32 %v1232, %v1234
        %v1236 = vrot.slane %v1220, %v1235
        %v1238 = vunpack.c.l.s4 1966171168
        %v1239 = vunpack.c.0.s8 %v1238
        %v1240 = vlaneseq
        %v1241 = vshrl.u32 %v1240, 7
        %v1242 = vsub.s32 %v1239, %v1241
        %v1243 = vrot.slane %v1227, %v1242
        %v1245 = vunpack.c.l.s4 1966171168
        %v1246 = vunpack.c.0.s8 %v1245
        %v1247 = vlaneseq
        %v1248 = vshrl.u32 %v1247, 7
        %v1249 = vsub.s32 %v1246, %v1248
        %v1250 = vrot.slane %v1228, %v1249
        %v1252 = vunpack.c.l.s4 1966171168
        %v1253 = vunpack.c.0.s8 %v1252
        %v1254 = vlaneseq
        %v1255 = vshrl.u32 %v1254, 7
        %v1256 = vsub.s32 %v1253, %v1255
        %v1257 = vrot.slane %v1229, %v1256
        %v1258 = vcombine.high %v1236, %v1236
        %v1259 = vcombine.high %v1243, %v1243
        %v1260 = vcombine.high %v1250, %v1250
        %v1261 = vcombine.high %v1257, %v1257
        %v1262 = vlaneseq
        %v1263 = vshrl.u32 %v1262, 7
        %v1264 = vsub.s32 0, %v1263
        %v1265 = vrot.slane %v1187, %v1264
        %v1266 = vlaneseq
        %v1267 = vshrl.u32 %v1266, 7
        %v1268 = vsub.s32 0, %v1267
        %v1269 = vrot.slane %v1201, %v1268
        %v1270 = vlaneseq
        %v1271 = vshrl.u32 %v1270, 7
        %v1272 = vsub.s32 0, %v1271
        %v1273 = vrot.slane %v1209, %v1272
        %v1274 = vlaneseq
        %v1275 = vshrl.u32 %v1274, 7
        %v1276 = vsub.s32 0, %v1275
        %v1277 = vrot.slane %v1211, %v1276
        %v1278 = vlaneseq
        %v1279 = vshrl.u32 %v1278, 7
        %v1280 = vsub.s32 0, %v1279
        %v1281 = vrot.slane %v1194, %v1280
        %v1282 = vlaneseq
        %v1283 = vshrl.u32 %v1282, 7
        %v1284 = vsub.s32 0, %v1283
        %v1285 = vrot.slane %v1208, %v1284
        %v1286 = vlaneseq
        %v1287 = vshrl.u32 %v1286, 7
        %v1288 = vsub.s32 0, %v1287
        %v1289 = vrot.slane %v1210, %v1288
        %v1290 = vlaneseq
        %v1291 = vshrl.u32 %v1290, 7
        %v1292 = vsub.s32 0, %v1291
        %v1293 = vrot.slane %v1212, %v1292
        %v1294 = vlaneseq
        %v1295 = vshrl.u32 %v1294, 7
        %v1296 = vsub.s32 0, %v1295
        %v1297 = vrot.slane %v1236, %v1296
        %v1298 = vlaneseq
        %v1299 = vshrl.u32 %v1298, 7
        %v1300 = vsub.s32 0, %v1299
        %v1301 = vrot.slane %v1250, %v1300
        %v1302 = vlaneseq
        %v1303 = vshrl.u32 %v1302, 7
        %v1304 = vsub.s32 0, %v1303
        %v1305 = vrot.slane %v1258, %v1304
        %v1306 = vlaneseq
        %v1307 = vshrl.u32 %v1306, 7
        %v1308 = vsub.s32 0, %v1307
        %v1309 = vrot.slane %v1260, %v1308
        %v1310 = vlaneseq
        %v1311 = vshrl.u32 %v1310, 7
        %v1312 = vsub.s32 0, %v1311
        %v1313 = vrot.slane %v1243, %v1312
        %v1314 = vlaneseq
        %v1315 = vshrl.u32 %v1314, 7
        %v1316 = vsub.s32 0, %v1315
        %v1317 = vrot.slane %v1257, %v1316
        %v1318 = vlaneseq
        %v1319 = vshrl.u32 %v1318, 7
        %v1320 = vsub.s32 0, %v1319
        %v1321 = vrot.slane %v1259, %v1320
        %v1322 = vlaneseq
        %v1323 = vshrl.u32 %v1322, 7
        %v1324 = vsub.s32 0, %v1323
        %v1325 = vrot.slane %v1261, %v1324
        %vm1326 = vcmp.eq.s32.totalorder %v1159, %v1265
        %vm1327 = vcmp.eq.s32.totalorder %v1160, %v1265
        %vm1328 = vcmp.eq.s32.totalorder %v1161, %v1265
        %vm1329 = vcmp.eq.s32.totalorder %v1162, %v1265
        %vm1330 = vcmp.eq.s32.totalorder %v1163, %v1265
        %vm1331 = vcmp.eq.s32.totalorder %v1159, %v1269
        %vm1332 = vcmp.eq.s32.totalorder %v1160, %v1269
        %vm1333 = vcmp.eq.s32.totalorder %v1161, %v1269
        %vm1334 = vcmp.eq.s32.totalorder %v1162, %v1269
        %vm1335 = vcmp.eq.s32.totalorder %v1163, %v1269
        %vm1336 = vcmp.eq.s32.totalorder %v1159, %v1273
        %vm1337 = vcmp.eq.s32.totalorder %v1160, %v1273
        %vm1338 = vcmp.eq.s32.totalorder %v1161, %v1273
        %vm1339 = vcmp.eq.s32.totalorder %v1162, %v1273
        %vm1340 = vcmp.eq.s32.totalorder %v1163, %v1273
        %vm1341 = vcmp.eq.s32.totalorder %v1159, %v1277
        %vm1342 = vcmp.eq.s32.totalorder %v1160, %v1277
        %vm1343 = vcmp.eq.s32.totalorder %v1161, %v1277
        %vm1344 = vcmp.eq.s32.totalorder %v1162, %v1277
        %vm1345 = vcmp.eq.s32.totalorder %v1163, %v1277
        %vm1346 = vcmp.eq.s32.totalorder %v1159, %v1281
        %vm1347 = vcmp.eq.s32.totalorder %v1160, %v1281
        %vm1348 = vcmp.eq.s32.totalorder %v1161, %v1281
        %vm1349 = vcmp.eq.s32.totalorder %v1162, %v1281
        %vm1350 = vcmp.eq.s32.totalorder %v1163, %v1281
        %vm1351 = vcmp.eq.s32.totalorder %v1159, %v1285
        %vm1352 = vcmp.eq.s32.totalorder %v1160, %v1285
        %vm1353 = vcmp.eq.s32.totalorder %v1161, %v1285
        %vm1354 = vcmp.eq.s32.totalorder %v1162, %v1285
        %vm1355 = vcmp.eq.s32.totalorder %v1163, %v1285
        %vm1356 = vcmp.eq.s32.totalorder %v1159, %v1289
        %vm1357 = vcmp.eq.s32.totalorder %v1160, %v1289
        %vm1358 = vcmp.eq.s32.totalorder %v1161, %v1289
        %vm1359 = vcmp.eq.s32.totalorder %v1162, %v1289
        %vm1360 = vcmp.eq.s32.totalorder %v1163, %v1289
        %vm1361 = vcmp.eq.s32.totalorder %v1159, %v1293
        %vm1362 = vcmp.eq.s32.totalorder %v1160, %v1293
        %vm1363 = vcmp.eq.s32.totalorder %v1161, %v1293
        %vm1364 = vcmp.eq.s32.totalorder %v1162, %v1293
        %vm1365 = vcmp.eq.s32.totalorder %v1163, %v1293
        %vm1366 = vcmp.eq.s32.totalorder %v1159, %v1297
        %vm1367 = vcmp.eq.s32.totalorder %v1160, %v1297
        %vm1368 = vcmp.eq.s32.totalorder %v1161, %v1297
        %vm1369 = vcmp.eq.s32.totalorder %v1162, %v1297
        %vm1370 = vcmp.eq.s32.totalorder %v1163, %v1297
        %vm1371 = vcmp.eq.s32.totalorder %v1159, %v1301
        %vm1372 = vcmp.eq.s32.totalorder %v1160, %v1301
        %vm1373 = vcmp.eq.s32.totalorder %v1161, %v1301
        %vm1374 = vcmp.eq.s32.totalorder %v1162, %v1301
        %vm1375 = vcmp.eq.s32.totalorder %v1163, %v1301
        %vm1376 = vcmp.eq.s32.totalorder %v1159, %v1305
        %vm1377 = vcmp.eq.s32.totalorder %v1160, %v1305
        %vm1378 = vcmp.eq.s32.totalorder %v1161, %v1305
        %vm1379 = vcmp.eq.s32.totalorder %v1162, %v1305
        %vm1380 = vcmp.eq.s32.totalorder %v1163, %v1305
        %vm1381 = vcmp.eq.s32.totalorder %v1159, %v1309
        %vm1382 = vcmp.eq.s32.totalorder %v1160, %v1309
        %vm1383 = vcmp.eq.s32.totalorder %v1161, %v1309
        %vm1384 = vcmp.eq.s32.totalorder %v1162, %v1309
        %vm1385 = vcmp.eq.s32.totalorder %v1163, %v1309
        %vm1386 = vcmp.eq.s32.totalorder %v1159, %v1313
        %vm1387 = vcmp.eq.s32.totalorder %v1160, %v1313
        %vm1388 = vcmp.eq.s32.totalorder %v1161, %v1313
        %vm1389 = vcmp.eq.s32.totalorder %v1162, %v1313
        %vm1390 = vcmp.eq.s32.totalorder %v1163, %v1313
        %vm1391 = vcmp.eq.s32.totalorder %v1159, %v1317
        %vm1392 = vcmp.eq.s32.totalorder %v1160, %v1317
        %vm1393 = vcmp.eq.s32.totalorder %v1161, %v1317
        %vm1394 = vcmp.eq.s32.totalorder %v1162, %v1317
        %vm1395 = vcmp.eq.s32.totalorder %v1163, %v1317
        %vm1396 = vcmp.eq.s32.totalorder %v1159, %v1321
        %vm1397 = vcmp.eq.s32.totalorder %v1160, %v1321
        %vm1398 = vcmp.eq.s32.totalorder %v1161, %v1321
        %vm1399 = vcmp.eq.s32.totalorder %v1162, %v1321
        %vm1400 = vcmp.eq.s32.totalorder %v1163, %v1321
        %vm1401 = vcmp.eq.s32.totalorder %v1159, %v1325
        %vm1402 = vcmp.eq.s32.totalorder %v1160, %v1325
        %vm1403 = vcmp.eq.s32.totalorder %v1161, %v1325
        %vm1404 = vcmp.eq.s32.totalorder %v1162, %v1325
        %vm1405 = vcmp.eq.s32.totalorder %v1163, %v1325
        %v1406 = vsel %vm1326, %v646, 0.0
        %v1407 = vsel %vm1327, %v647, 0.0
        %v1408 = vsel %vm1328, %v648, 0.0
        %v1409 = vsel %vm1329, %v649, 0.0
        %v1410 = vsel %vm1330, %v650, 0.0
        %v1411 = vsel %vm1331, %v651, 0.0
        %v1412 = vsel %vm1332, %v652, 0.0
        %v1413 = vsel %vm1333, %v653, 0.0
        %v1414 = vsel %vm1334, %v654, 0.0
        %v1415 = vsel %vm1335, %v655, 0.0
        %v1416 = vsel %vm1336, %v656, 0.0
        %v1417 = vsel %vm1337, %v657, 0.0
        %v1418 = vsel %vm1338, %v658, 0.0
        %v1419 = vsel %vm1339, %v659, 0.0
        %v1420 = vsel %vm1340, %v660, 0.0
        %v1421 = vsel %vm1341, %v661, 0.0
        %v1422 = vsel %vm1342, %v662, 0.0
        %v1423 = vsel %vm1343, %v663, 0.0
        %v1424 = vsel %vm1344, %v664, 0.0
        %v1425 = vsel %vm1345, %v665, 0.0
        %v1426 = vsel %vm1346, %v666, 0.0
        %v1427 = vsel %vm1347, %v667, 0.0
        %v1428 = vsel %vm1348, %v668, 0.0
        %v1429 = vsel %vm1349, %v669, 0.0
        %v1430 = vsel %vm1350, %v670, 0.0
        %v1431 = vsel %vm1351, %v671, 0.0
        %v1432 = vsel %vm1352, %v672, 0.0
        %v1433 = vsel %vm1353, %v673, 0.0
        %v1434 = vsel %vm1354, %v674, 0.0
        %v1435 = vsel %vm1355, %v675, 0.0
        %v1436 = vsel %vm1356, %v676, 0.0
        %v1437 = vsel %vm1357, %v677, 0.0
        %v1438 = vsel %vm1358, %v678, 0.0
        %v1439 = vsel %vm1359, %v679, 0.0
        %v1440 = vsel %vm1360, %v680, 0.0
        %v1441 = vsel %vm1361, %v681, 0.0
        %v1442 = vsel %vm1362, %v682, 0.0
        %v1443 = vsel %vm1363, %v683, 0.0
        %v1444 = vsel %vm1364, %v684, 0.0
        %v1445 = vsel %vm1365, %v685, 0.0
        %v1446 = vsel %vm1366, %v686, 0.0
        %v1447 = vsel %vm1367, %v687, 0.0
        %v1448 = vsel %vm1368, %v688, 0.0
        %v1449 = vsel %vm1369, %v689, 0.0
        %v1450 = vsel %vm1370, %v690, 0.0
        %v1451 = vsel %vm1371, %v691, 0.0
        %v1452 = vsel %vm1372, %v692, 0.0
        %v1453 = vsel %vm1373, %v693, 0.0
        %v1454 = vsel %vm1374, %v694, 0.0
        %v1455 = vsel %vm1375, %v695, 0.0
        %v1456 = vsel %vm1376, %v696, 0.0
        %v1457 = vsel %vm1377, %v697, 0.0
        %v1458 = vsel %vm1378, %v698, 0.0
        %v1459 = vsel %vm1379, %v699, 0.0
        %v1460 = vsel %vm1380, %v700, 0.0
        %v1461 = vsel %vm1381, %v701, 0.0
        %v1462 = vsel %vm1382, %v702, 0.0
        %v1463 = vsel %vm1383, %v703, 0.0
        %v1464 = vsel %vm1384, %v704, 0.0
        %v1465 = vsel %vm1385, %v705, 0.0
        %v1466 = vsel %vm1386, %v706, 0.0
        %v1467 = vsel %vm1387, %v707, 0.0
        %v1468 = vsel %vm1388, %v708, 0.0
        %v1469 = vsel %vm1389, %v709, 0.0
        %v1470 = vsel %vm1390, %v710, 0.0
        %v1471 = vsel %vm1391, %v711, 0.0
        %v1472 = vsel %vm1392, %v712, 0.0
        %v1473 = vsel %vm1393, %v713, 0.0
        %v1474 = vsel %vm1394, %v714, 0.0
        %v1475 = vsel %vm1395, %v715, 0.0
        %v1476 = vsel %vm1396, %v716, 0.0
        %v1477 = vsel %vm1397, %v717, 0.0
        %v1478 = vsel %vm1398, %v718, 0.0
        %v1479 = vsel %vm1399, %v719, 0.0
        %v1480 = vsel %vm1400, %v720, 0.0
        %v1481 = vsel %vm1401, %v721, 0.0
        %v1482 = vsel %vm1402, %v722, 0.0
        %v1483 = vsel %vm1403, %v723, 0.0
        %v1484 = vsel %vm1404, %v724, 0.0
        %v1485 = vsel %vm1405, %v725, 0.0
        %v1486 = vsel %vm404, %v1406, 0.0
        %v1487 = vsel %vm404, %v1407, 0.0
        %v1488 = vadd.f32 %v1486, %v1487
        %v1489 = vsel %vm404, %v1408, 0.0
        %v1490 = vadd.f32 %v1488, %v1489
        %v1491 = vsel %vm404, %v1409, 0.0
        %v1492 = vadd.f32 %v1490, %v1491
        %v1493 = vsel %vm412, %v1410, 0.0
        %v1494 = vadd.f32 %v1492, %v1493
        %v1495 = vrot.slane %v1494, 4
        %v1496 = vadd.f32 %v1494, %v1495
        %v1497 = vrot.slane %v1496, 2
        %v1498 = vadd.f32 %v1496, %v1497
        %v1499 = vrot.slane %v1498, 1
        %v1500 = vadd.f32 %v1498, %v1499
        %v1501 = vsel %vm404, %v1411, 0.0
        %v1502 = vsel %vm404, %v1412, 0.0
        %v1503 = vadd.f32 %v1501, %v1502
        %v1504 = vsel %vm404, %v1413, 0.0
        %v1505 = vadd.f32 %v1503, %v1504
        %v1506 = vsel %vm404, %v1414, 0.0
        %v1507 = vadd.f32 %v1505, %v1506
        %v1508 = vsel %vm412, %v1415, 0.0
        %v1509 = vadd.f32 %v1507, %v1508
        %v1510 = vrot.slane %v1509, 4
        %v1511 = vadd.f32 %v1509, %v1510
        %v1512 = vrot.slane %v1511, 2
        %v1513 = vadd.f32 %v1511, %v1512
        %v1514 = vrot.slane %v1513, 1
        %v1515 = vadd.f32 %v1513, %v1514
        %v1516 = vsel %vm404, %v1416, 0.0
        %v1517 = vsel %vm404, %v1417, 0.0
        %v1518 = vadd.f32 %v1516, %v1517
        %v1519 = vsel %vm404, %v1418, 0.0
        %v1520 = vadd.f32 %v1518, %v1519
        %v1521 = vsel %vm404, %v1419, 0.0
        %v1522 = vadd.f32 %v1520, %v1521
        %v1523 = vsel %vm412, %v1420, 0.0
        %v1524 = vadd.f32 %v1522, %v1523
        %v1525 = vrot.slane %v1524, 4
        %v1526 = vadd.f32 %v1524, %v1525
        %v1527 = vrot.slane %v1526, 2
        %v1528 = vadd.f32 %v1526, %v1527
        %v1529 = vrot.slane %v1528, 1
        %v1530 = vadd.f32 %v1528, %v1529
        %v1531 = vsel %vm404, %v1421, 0.0
        %v1532 = vsel %vm404, %v1422, 0.0
        %v1533 = vadd.f32 %v1531, %v1532
        %v1534 = vsel %vm404, %v1423, 0.0
        %v1535 = vadd.f32 %v1533, %v1534
        %v1536 = vsel %vm404, %v1424, 0.0
        %v1537 = vadd.f32 %v1535, %v1536
        %v1538 = vsel %vm412, %v1425, 0.0
        %v1539 = vadd.f32 %v1537, %v1538
        %v1540 = vrot.slane %v1539, 4
        %v1541 = vadd.f32 %v1539, %v1540
        %v1542 = vrot.slane %v1541, 2
        %v1543 = vadd.f32 %v1541, %v1542
        %v1544 = vrot.slane %v1543, 1
        %v1545 = vadd.f32 %v1543, %v1544
        %v1546 = vsel %vm404, %v1426, 0.0
        %v1547 = vsel %vm404, %v1427, 0.0
        %v1548 = vadd.f32 %v1546, %v1547
        %v1549 = vsel %vm404, %v1428, 0.0
        %v1550 = vadd.f32 %v1548, %v1549
        %v1551 = vsel %vm404, %v1429, 0.0
        %v1552 = vadd.f32 %v1550, %v1551
        %v1553 = vsel %vm412, %v1430, 0.0
        %v1554 = vadd.f32 %v1552, %v1553
        %v1555 = vrot.slane %v1554, 4
        %v1556 = vadd.f32 %v1554, %v1555
        %v1557 = vrot.slane %v1556, 2
        %v1558 = vadd.f32 %v1556, %v1557
        %v1559 = vrot.slane %v1558, 1
        %v1560 = vadd.f32 %v1558, %v1559
        %v1561 = vsel %vm404, %v1431, 0.0
        %v1562 = vsel %vm404, %v1432, 0.0
        %v1563 = vadd.f32 %v1561, %v1562
        %v1564 = vsel %vm404, %v1433, 0.0
        %v1565 = vadd.f32 %v1563, %v1564
        %v1566 = vsel %vm404, %v1434, 0.0
        %v1567 = vadd.f32 %v1565, %v1566
        %v1568 = vsel %vm412, %v1435, 0.0
        %v1569 = vadd.f32 %v1567, %v1568
        %v1570 = vrot.slane %v1569, 4
        %v1571 = vadd.f32 %v1569, %v1570
        %v1572 = vrot.slane %v1571, 2
        %v1573 = vadd.f32 %v1571, %v1572
        %v1574 = vrot.slane %v1573, 1
        %v1575 = vadd.f32 %v1573, %v1574
        %v1576 = vsel %vm404, %v1436, 0.0
        %v1577 = vsel %vm404, %v1437, 0.0
        %v1578 = vadd.f32 %v1576, %v1577
        %v1579 = vsel %vm404, %v1438, 0.0
        %v1580 = vadd.f32 %v1578, %v1579
        %v1581 = vsel %vm404, %v1439, 0.0
        %v1582 = vadd.f32 %v1580, %v1581
        %v1583 = vsel %vm412, %v1440, 0.0
        %v1584 = vadd.f32 %v1582, %v1583
        %v1585 = vrot.slane %v1584, 4
        %v1586 = vadd.f32 %v1584, %v1585
        %v1587 = vrot.slane %v1586, 2
        %v1588 = vadd.f32 %v1586, %v1587
        %v1589 = vrot.slane %v1588, 1
        %v1590 = vadd.f32 %v1588, %v1589
        %v1591 = vsel %vm404, %v1441, 0.0
        %v1592 = vsel %vm404, %v1442, 0.0
        %v1593 = vadd.f32 %v1591, %v1592
        %v1594 = vsel %vm404, %v1443, 0.0
        %v1595 = vadd.f32 %v1593, %v1594
        %v1596 = vsel %vm404, %v1444, 0.0
        %v1597 = vadd.f32 %v1595, %v1596
        %v1598 = vsel %vm412, %v1445, 0.0
        %v1599 = vadd.f32 %v1597, %v1598
        %v1600 = vrot.slane %v1599, 4
        %v1601 = vadd.f32 %v1599, %v1600
        %v1602 = vrot.slane %v1601, 2
        %v1603 = vadd.f32 %v1601, %v1602
        %v1604 = vrot.slane %v1603, 1
        %v1605 = vadd.f32 %v1603, %v1604
        %v1606 = vsel %vm404, %v1446, 0.0
        %v1607 = vsel %vm404, %v1447, 0.0
        %v1608 = vadd.f32 %v1606, %v1607
        %v1609 = vsel %vm404, %v1448, 0.0
        %v1610 = vadd.f32 %v1608, %v1609
        %v1611 = vsel %vm404, %v1449, 0.0
        %v1612 = vadd.f32 %v1610, %v1611
        %v1613 = vsel %vm412, %v1450, 0.0
        %v1614 = vadd.f32 %v1612, %v1613
        %v1615 = vrot.slane %v1614, 4
        %v1616 = vadd.f32 %v1614, %v1615
        %v1617 = vrot.slane %v1616, 2
        %v1618 = vadd.f32 %v1616, %v1617
        %v1619 = vrot.slane %v1618, 1
        %v1620 = vadd.f32 %v1618, %v1619
        %v1621 = vsel %vm404, %v1451, 0.0
        %v1622 = vsel %vm404, %v1452, 0.0
        %v1623 = vadd.f32 %v1621, %v1622
        %v1624 = vsel %vm404, %v1453, 0.0
        %v1625 = vadd.f32 %v1623, %v1624
        %v1626 = vsel %vm404, %v1454, 0.0
        %v1627 = vadd.f32 %v1625, %v1626
        %v1628 = vsel %vm412, %v1455, 0.0
        %v1629 = vadd.f32 %v1627, %v1628
        %v1630 = vrot.slane %v1629, 4
        %v1631 = vadd.f32 %v1629, %v1630
        %v1632 = vrot.slane %v1631, 2
        %v1633 = vadd.f32 %v1631, %v1632
        %v1634 = vrot.slane %v1633, 1
        %v1635 = vadd.f32 %v1633, %v1634
        %v1636 = vsel %vm404, %v1456, 0.0
        %v1637 = vsel %vm404, %v1457, 0.0
        %v1638 = vadd.f32 %v1636, %v1637
        %v1639 = vsel %vm404, %v1458, 0.0
        %v1640 = vadd.f32 %v1638, %v1639
        %v1641 = vsel %vm404, %v1459, 0.0
        %v1642 = vadd.f32 %v1640, %v1641
        %v1643 = vsel %vm412, %v1460, 0.0
        %v1644 = vadd.f32 %v1642, %v1643
        %v1645 = vrot.slane %v1644, 4
        %v1646 = vadd.f32 %v1644, %v1645
        %v1647 = vrot.slane %v1646, 2
        %v1648 = vadd.f32 %v1646, %v1647
        %v1649 = vrot.slane %v1648, 1
        %v1650 = vadd.f32 %v1648, %v1649
        %v1651 = vsel %vm404, %v1461, 0.0
        %v1652 = vsel %vm404, %v1462, 0.0
        %v1653 = vadd.f32 %v1651, %v1652
        %v1654 = vsel %vm404, %v1463, 0.0
        %v1655 = vadd.f32 %v1653, %v1654
        %v1656 = vsel %vm404, %v1464, 0.0
        %v1657 = vadd.f32 %v1655, %v1656
        %v1658 = vsel %vm412, %v1465, 0.0
        %v1659 = vadd.f32 %v1657, %v1658
        %v1660 = vrot.slane %v1659, 4
        %v1661 = vadd.f32 %v1659, %v1660
        %v1662 = vrot.slane %v1661, 2
        %v1663 = vadd.f32 %v1661, %v1662
        %v1664 = vrot.slane %v1663, 1
        %v1665 = vadd.f32 %v1663, %v1664
        %v1666 = vsel %vm404, %v1466, 0.0
        %v1667 = vsel %vm404, %v1467, 0.0
        %v1668 = vadd.f32 %v1666, %v1667
        %v1669 = vsel %vm404, %v1468, 0.0
        %v1670 = vadd.f32 %v1668, %v1669
        %v1671 = vsel %vm404, %v1469, 0.0
        %v1672 = vadd.f32 %v1670, %v1671
        %v1673 = vsel %vm412, %v1470, 0.0
        %v1674 = vadd.f32 %v1672, %v1673
        %v1675 = vrot.slane %v1674, 4
        %v1676 = vadd.f32 %v1674, %v1675
        %v1677 = vrot.slane %v1676, 2
        %v1678 = vadd.f32 %v1676, %v1677
        %v1679 = vrot.slane %v1678, 1
        %v1680 = vadd.f32 %v1678, %v1679
        %v1681 = vsel %vm404, %v1471, 0.0
        %v1682 = vsel %vm404, %v1472, 0.0
        %v1683 = vadd.f32 %v1681, %v1682
        %v1684 = vsel %vm404, %v1473, 0.0
        %v1685 = vadd.f32 %v1683, %v1684
        %v1686 = vsel %vm404, %v1474, 0.0
        %v1687 = vadd.f32 %v1685, %v1686
        %v1688 = vsel %vm412, %v1475, 0.0
        %v1689 = vadd.f32 %v1687, %v1688
        %v1690 = vrot.slane %v1689, 4
        %v1691 = vadd.f32 %v1689, %v1690
        %v1692 = vrot.slane %v1691, 2
        %v1693 = vadd.f32 %v1691, %v1692
        %v1694 = vrot.slane %v1693, 1
        %v1695 = vadd.f32 %v1693, %v1694
        %v1696 = vsel %vm404, %v1476, 0.0
        %v1697 = vsel %vm404, %v1477, 0.0
        %v1698 = vadd.f32 %v1696, %v1697
        %v1699 = vsel %vm404, %v1478, 0.0
        %v1700 = vadd.f32 %v1698, %v1699
        %v1701 = vsel %vm404, %v1479, 0.0
        %v1702 = vadd.f32 %v1700, %v1701
        %v1703 = vsel %vm412, %v1480, 0.0
        %v1704 = vadd.f32 %v1702, %v1703
        %v1705 = vrot.slane %v1704, 4
        %v1706 = vadd.f32 %v1704, %v1705
        %v1707 = vrot.slane %v1706, 2
        %v1708 = vadd.f32 %v1706, %v1707
        %v1709 = vrot.slane %v1708, 1
        %v1710 = vadd.f32 %v1708, %v1709
        %v1711 = vsel %vm404, %v1481, 0.0
        %v1712 = vsel %vm404, %v1482, 0.0
        %v1713 = vadd.f32 %v1711, %v1712
        %v1714 = vsel %vm404, %v1483, 0.0
        %v1715 = vadd.f32 %v1713, %v1714
        %v1716 = vsel %vm404, %v1484, 0.0
        %v1717 = vadd.f32 %v1715, %v1716
        %v1718 = vsel %vm412, %v1485, 0.0
        %v1719 = vadd.f32 %v1717, %v1718
        %v1720 = vrot.slane %v1719, 4
        %v1721 = vadd.f32 %v1719, %v1720
        %v1722 = vrot.slane %v1721, 2
        %v1723 = vadd.f32 %v1721, %v1722
        %v1724 = vrot.slane %v1723, 1
        %v1725 = vadd.f32 %v1723, %v1724
        %v1726 = vsub.f32 %v1127, %v1500
        %v1727 = vsub.f32 %v1129, %v1515
        %v1728 = vsub.f32 %v1131, %v1530
        %v1729 = vsub.f32 %v1133, %v1545
        %v1730 = vsub.f32 %v1135, %v1560
        %v1731 = vsub.f32 %v1137, %v1575
        %v1732 = vsub.f32 %v1139, %v1590
        %v1733 = vsub.f32 %v1141, %v1605
        %v1734 = vsub.f32 %v1143, %v1620
        %v1735 = vsub.f32 %v1145, %v1635
        %v1736 = vsub.f32 %v1147, %v1650
        %v1737 = vsub.f32 %v1149, %v1665
        %v1738 = vsub.f32 %v1151, %v1680
        %v1739 = vsub.f32 %v1153, %v1695
        %v1740 = vsub.f32 %v1155, %v1710
        %v1741 = vsub.f32 %v1157, %v1725
        %v1744 = vrot.slane %v376, 1
        %v1745 = vrot.slane %v376, 2
        %v1746 = vrot.slane %v376, 3
        %v1747 = vrot.slane %v376, 4
        %v1748 = vrot.slane %v376, 5
        %v1749 = vrot.slane %v376, 6
        %v1750 = vrot.slane %v376, 7
        %v1751 = vrot.slane %v377, 1
        %v1752 = vrot.slane %v377, 2
        %v1753 = vrot.slane %v377, 3
        %v1754 = vrot.slane %v377, 4
        %v1755 = vrot.slane %v377, 5
        %v1756 = vrot.slane %v377, 6
        %v1757 = vrot.slane %v377, 7
        %v1774 = vmul.f32 %v1726, %v376
        %v1775 = vmul.f32 %v1727, %v1744
        %v1776 = vmul.f32 %v1728, %v1745
        %v1777 = vmul.f32 %v1729, %v1746
        %v1778 = vmul.f32 %v1730, %v1747
        %v1779 = vmul.f32 %v1731, %v1748
        %v1780 = vmul.f32 %v1732, %v1749
        %v1781 = vmul.f32 %v1733, %v1750
        %v1782 = vmul.f32 %v1734, %v377
        %v1783 = vmul.f32 %v1735, %v1751
        %v1784 = vmul.f32 %v1736, %v1752
        %v1785 = vmul.f32 %v1737, %v1753
        %v1786 = vmul.f32 %v1738, %v1754
        %v1787 = vmul.f32 %v1739, %v1755
        %v1788 = vmul.f32 %v1740, %v1756
        %v1789 = vmul.f32 %v1741, %v1757
        %v1806 = vrot.slane %v1775, 7
        %vm1807 = vcmask 1041409
        %v1808 = vsel %vm1807, %v1806, %v1774
        %v1809 = vrot.slane %v1776, 6
        %vm1810 = vcmask 1042434
        %v1811 = vsel %vm1810, %v1809, %v1808
        %v1812 = vrot.slane %v1777, 5
        %vm1813 = vcmask 1043459
        %v1814 = vsel %vm1813, %v1812, %v1811
        %v1815 = vrot.slane %v1778, 4
        %vm1816 = vcmask 1044484
        %v1817 = vsel %vm1816, %v1815, %v1814
        %v1818 = vrot.slane %v1779, 3
        %vm1819 = vcmask 1045509
        %v1820 = vsel %vm1819, %v1818, %v1817
        %v1821 = vrot.slane %v1780, 2
        %vm1822 = vcmask 1046534
        %v1823 = vsel %vm1822, %v1821, %v1820
        %v1824 = vrot.slane %v1781, 1
        %vm1825 = vcmask 1047559
        %v1826 = vsel %vm1825, %v1824, %v1823
        %v1827 = vrot.slane %v1783, 7
        %v1828 = vsel %vm1807, %v1827, %v1782
        %v1829 = vrot.slane %v1784, 6
        %v1830 = vsel %vm1810, %v1829, %v1828
        %v1831 = vrot.slane %v1785, 5
        %v1832 = vsel %vm1813, %v1831, %v1830
        %v1833 = vrot.slane %v1786, 4
        %v1834 = vsel %vm1816, %v1833, %v1832
        %v1835 = vrot.slane %v1787, 3
        %v1836 = vsel %vm1819, %v1835, %v1834
        %v1837 = vrot.slane %v1788, 2
        %v1838 = vsel %vm1822, %v1837, %v1836
        %v1839 = vrot.slane %v1789, 1
        %v1840 = vsel %vm1825, %v1839, %v1838
        %v1843 = vsel %vm404, %v1826, 0.0
        %v1844 = vsel %vm404, %v1840, 0.0
        %v1845 = vadd.f32 %v1843, %v1844
        %1846 = vadd.xlane.f32.xlu0 %v1845
        %v1847 = vpop.xlane.xlu0 %1846
        %v1848 = vrot.slane %v1847, 4
        %v1849 = vadd.f32 %v1847, %v1848
        %v1850 = vrot.slane %v1849, 2
        %v1851 = vadd.f32 %v1849, %v1850
        %v1852 = vrot.slane %v1851, 1
        %v1853 = vadd.f32 %v1851, %v1852
        %s1854 = vtos %v1853
        %v1855 = vsel %vm404, %v376, 0.0
        %v1856 = vsel %vm404, %v377, 0.0
        %v1857 = vadd.f32 %v1855, %v1856
        %1858 = vadd.xlane.f32.xlu0 %v1857
        %v1859 = vpop.xlane.xlu0 %1858
        %v1860 = vrot.slane %v1859, 4
        %v1861 = vadd.f32 %v1859, %v1860
        %v1862 = vrot.slane %v1861, 2
        %v1863 = vadd.f32 %v1861, %v1862
        %v1864 = vrot.slane %v1863, 1
        %v1865 = vadd.f32 %v1863, %v1864
        %s1866 = vtos %v1865
        %p1867 = scmp.eq.s32.totalorder %s28, 0
        // Predicated region
        $region45: #{tpu_custom_call.1} parent=31 // pred_check
          %p1868 = pneg %p1867
        $region46: #{tpu_custom_call.1} parent=31 // pred_check_branch
          %1870 = sbr.rel (%p1868) target = $region48
        $region47: #{tpu_custom_call.1} parent=31 // pred_region
          %1871 = vst [vmem:[%s290] sm:$0x3] 0.0
        $region48: #{tpu_custom_call.1} parent=31 // pred_fallthru
          _
        %v1872 = vld [vmem:[%s290] sm:$0x3]
        %vm1873 = vcmp.eq.s32.totalorder %v1159, 0
        %v1874 = vstv %s1854
        %v1875 = vstv %s1866
        %v1876 = vsel %vm1873, %v1874, %v1875
        %v1877 = vadd.f32 %v1872, %v1876
        %1878 = vst [vmem:[%s290] sm:$0x3] %v1877
        %s1879 = sand.u32 %s127, 1
        %s1880 = scalar_lea.sflag [#allocation4], %s1879
        %s1881 = sand.u32 %s127, 1
        %s1882 = smul.addr %s1881, 2
        %s1883 = scalar_lea.vmem [#allocation8], %s1882
        // Predicated region
        $region49: #{tpu_custom_call.1} parent=31 // pred_check
          %p1884 = pneg %p137
        $region50: #{tpu_custom_call.1} parent=31 // pred_check_branch
          %1886 = sbr.rel (%p1884) target = $region52
        $region51: #{tpu_custom_call.1} parent=31 // pred_region
          %s1888 = ssub.s32 32, 32
          %1889 = vsyncadd %s1880, %s1888
          %s1890 = smul.addr %s27, 32
          %s1891 = scalar_lea.hbm %s3, %s1890
          %s1893 = sshll.u32 %s1883, 4
          %s1894 = int_to_ptr.vmem [resolvable:$true] %s1893
          %1896 = dma.vmem_to_hbm [thread:$0]  %s1894, 32, %s1891, %s1880
        $region52: #{tpu_custom_call.1} parent=31 // pred_fallthru
          _
      $region32: #{tpu_custom_call.1} parent=5 // pred_fallthru
        _
      %p1897 = scmp.le.s32.totalorder 2, %s18
      // Predicated region
      $region53: #{tpu_custom_call.1} parent=5 // pred_check
        %p1898 = pneg %p1897
      $region54: #{tpu_custom_call.1} parent=5 // pred_check_branch
        %1900 = sbr.rel (%p1898) target = $region56
      $region55: #{tpu_custom_call.1} parent=5 // pred_region
        %s1901 = ssub.s32 %s18, 2
        // Predicated region
        $region57: #{tpu_custom_call.1} parent=55 // pred_check
          %p1902 = pneg %p143
        $region58: #{tpu_custom_call.1} parent=55 // pred_check_branch
          %1904 = sbr.rel (%p1902) target = $region60
        $region59: #{tpu_custom_call.1} parent=55 // pred_region
          %s1905 = sand.u32 %s128, 1
          %s1906 = scalar_lea.sflag [#allocation4], %s1905
          %s1907 = sand.u32 %s128, 1
          %s1908 = smul.addr %s1907, 2
          %s1909 = scalar_lea.vmem [#allocation8], %s1908
          %1910 = dma.done %s1906, 32
        $region60: #{tpu_custom_call.1} parent=55 // pred_fallthru
          _
      $region56: #{tpu_custom_call.1} parent=5 // pred_fallthru
        _
    $region6: #{tpu_custom_call.1} parent=1 // loop_footer
      %s22 = sadd.s32 1, %s18
    $region7: #{tpu_custom_call.1} parent=1 // loop_footer_branch
      %17 = sbr.rel target = $region3
    $region8: #{tpu_custom_call.1} parent=1 // loop_exit
      _
    %1911 = vsyncpa [#allocation3], 1
    %s1912 = scalar_lea.sflag [#allocation3], 1
    %1913 = vsyncpa %s1912, 1
    %1914 = vsyncpa [#allocation6], 1
    %s1915 = scalar_lea.sflag [#allocation6], 1
    %1916 = vsyncpa %s1915, 1
    %1917 = vsyncpa [#allocation4], 1
    %s1918 = scalar_lea.sflag [#allocation4], 1
    %1919 = vsyncpa %s1918, 1

</llo_original>
